<compile_context>
chip_gen: v7x
topology: tpu7x:2x2x1
jax: 0.10.0
libtpu: 0.0.40
codegen_flags: <defaults>
</compile_context>

<pallas_src>
import jax
import jax.numpy as jnp
from jax.experimental import pallas as pl
from jax.experimental.pallas import tpu as pltpu


def _round_up(n: int, m: int) -> int:
    return ((n + m - 1) // m) * m


def _is_pow2(n: int) -> bool:
    return n > 0 and (n & (n - 1)) == 0


def _tpu_vmem_capacity_bytes() -> int:
    try:
        return int(pltpu.get_tpu_info().vmem_capacity_bytes)
    except Exception:
        return 64 * 1024 * 1024          # conservative: v7x has the smallest VMEM


def _tpu_rows_target() -> int:
    """LHS-row target per MXU pass: ~128 (v5e 4x128x128), ~256 (v6e/v7x 2x256x256)."""
    try:
        kind = jax.devices()[0].device_kind.lower()
    except Exception:
        return 128
    return 256 if ("v6" in kind or "v7" in kind) else 128


def _vmem_block_estimate(TB, Lp, D, Hp, x_isize, a_isize, o_isize, w_bytes, w_bufs):
    """Rough per-grid-step VMEM bytes: double-buffered pipelined blocks,
    weight buffers, and the in-kernel bf16/f32 intermediates."""
    R = TB * Lp
    pipelined = R * D * x_isize + TB * Lp * Lp * a_isize + R * Hp * o_isize
    interm = 2 * (R * D + TB * Lp * Lp)          # bf16 casts of x / a
    interm += 4 * R * Hp * 2                     # f32 xw / y intermediates
    if TB > 1 and Lp <= 64:
        interm += 6 * R * R                      # block-diagonal build (f32 + bf16)
    return 2 * pipelined + w_bufs * w_bytes + interm


def make_gnn_kernel(*, step, D, Hp, TB, Lp, share_w, have_w2, have_b2,
                    use_block_diag, ax_first, compute_dtype):
    """Kernel operand order: x(2D), a(3D), [w1], [w2/shared], b1, [b2], out."""
    R = TB * Lp

    def kernel(*refs):
        i = 0
        x_ref = refs[i]; i += 1
        a_ref = refs[i]; i += 1
        w1_ref = None
        if not share_w:
            w1_ref = refs[i]; i += 1
        w2_ref = None
        if have_w2:
            w2_ref = refs[i]; i += 1
        b1_ref = refs[i]; i += 1
        if have_b2:
            b2_ref = refs[i]; i += 1
        else:
            b2_ref = b1_ref
        o_ref = refs[i]

        x = x_ref[...].astype(compute_dtype)       # (R, D)  bf16
        a = a_ref[...].astype(compute_dtype)       # (TB, Lp, Lp) bf16

        if TB == 1:
            a2d = a.reshape(Lp, Lp)

            def a_matmul(z):
                return jnp.dot(a2d, z, preferred_element_type=jnp.float32)
        elif use_block_diag:
            # One deep (R, R) @ (R, C) MXU pass instead of TB shallow K=Lp
            # matmuls.  Built with iota/compare + one tiny matmul only (no
            # unaligned reshapes); Lp is a power of two so // and % are shifts.
            a_flat = a.reshape(R, Lp)                                    # free: Lp % 8 == 0
            sel = (jax.lax.broadcasted_iota(jnp.int32, (Lp, R), 1) % Lp
                   == jax.lax.broadcasted_iota(jnp.int32, (Lp, R), 0)
                   ).astype(compute_dtype)                               # (Lp, R)
            a_rep = jnp.dot(a_flat, sel, preferred_element_type=jnp.float32)  # (R, R)
            rblk = jax.lax.broadcasted_iota(jnp.int32, (R, R), 0) // Lp
            cblk = jax.lax.broadcasted_iota(jnp.int32, (R, R), 1) // Lp
            a_bd = jnp.where(rblk == cblk, a_rep, 0.0).astype(compute_dtype)

            def a_matmul(z):
                return jnp.dot(a_bd, z, preferred_element_type=jnp.float32)
        else:
            def a_matmul(z):
                z3 = z.reshape(TB, Lp, z.shape[-1])                      # free: Lp % 8 == 0
                y3 = jnp.einsum("bij,bjh->bih", a, z3,
                                preferred_element_type=jnp.float32)
                return y3.reshape(R, z.shape[-1])

        y = None
        for s in range(step):
            if s == 0:
                # shared case: W2 holds W1 padded to (Hp, Hp); rows :D feed step 0.
                w = w2_ref[:D, :] if share_w else w1_ref[...]            # (D, Hp) bf16
                b = b1_ref[...]
            else:
                w = w2_ref[...]                                          # (Hp, Hp) bf16
                b = b2_ref[...]
            if s == 0 and ax_first:
                # (A @ X) @ W: cheaper second matmul + smaller intermediate when D < Hp.
                ax = a_matmul(x)                                         # (R, D) f32
                y = jnp.dot(ax.astype(compute_dtype), w,
                            preferred_element_type=jnp.float32)          # (R, Hp) f32
            else:
                xw = jnp.dot(x, w, preferred_element_type=jnp.float32)   # (R, Hp) f32
                y = a_matmul(xw.astype(compute_dtype))
            y = y + b                                                    # f32 epilogue
            if s < step - 1:
                y = jnp.maximum(y, 0.0)
                # TODO(synk): dropout path (drop > 0) not implemented; module default drop=0.0.
                x = y.astype(compute_dtype)

        o_ref[...] = y.astype(o_ref.dtype)

    return kernel


def gnn_forward(X, A, W1, W2, b1, b2, *, step=2, share_w=None, share_b=None):
    """X: (B, L, D_in), A: (B, L, L) -> (B, L, H).

    share_w / share_b: whether W2 / b2 are the same parameter as W1 / b1 (the
    module shares W2=W1 iff input_dim==hidden_dim, else b2=b1).  Defaults to
    object-identity detection, which is lost under jax.jit; pass explicitly in
    that case (sharing only affects weight traffic, not correctness).
    """
    B, L, D = X.shape
    H = W1.shape[1]
    assert A.shape == (B, L, L)
    assert step >= 1

    if share_w is None:
        share_w = W2 is W1
    if share_b is None:
        share_b = b2 is b1
    if share_w:
        assert D == H, "shared W2 requires input_dim == hidden_dim"

    out_dtype = X.dtype
    cdt = jnp.bfloat16                         # MXU operand dtype; accumulate in f32
    o_isize = jnp.dtype(out_dtype).itemsize
    x_isize = X.dtype.itemsize
    a_isize = A.dtype.itemsize

    Lp = _round_up(max(L, 1), 8)               # sublane-align rows -> free reshapes
    Hp = max(128, _round_up(H, 128))           # lane-dense weights / output

    have_w2 = share_w or step >= 2
    have_b2 = (not share_b) and step >= 2
    w_bytes = ((Hp * Hp * 2 if have_w2 else 0)
               + (0 if share_w else D * Hp * 2)
               + (2 if have_b2 else 1) * Hp * 4)

    # ---- batch tile (TB) ---------------------------------------------------
    vmem_cap = _tpu_vmem_capacity_bytes()
    vmem_budget = int(0.45 * vmem_cap)
    rows_target = _tpu_rows_target()

    tb = max(1, rows_target // Lp)
    if B >= 2:
        tb = min(tb, B // 2)                   # >= 2 grid steps -> both v7x TCs busy
    tb = max(1, min(tb, B))
    while tb > 1 and _vmem_block_estimate(tb, Lp, D, Hp, x_isize, a_isize,
                                          o_isize, w_bytes, 1) > vmem_budget:
        tb //= 2
    # TODO(synk): if even TB == 1 exceeds the budget (very large L), tile A's
    # rows with a K-loop + VMEM accumulator instead of loading the full (L, L).

    TB, Bp = 1, B
    if tb > 1:
        chosen = None
        for cand in range(tb, 0, -1):          # prefer a divisor of B (no batch pad)
            if B % cand == 0 and 2 * cand > tb:
                chosen = cand
                break
        if chosen is not None:
            TB, Bp = chosen, B
        else:                                   # pad the batch: cheap when L is small
            TB, Bp = tb, _round_up(B, tb)

    R = TB * Lp
    grid = (Bp // TB,)
    use_block_diag = TB > 1 and Lp <= 64 and R <= 512 and _is_pow2(Lp)
    ax_first = D < Hp                           # step-0 matmul order

    # ---- operands (X / A stay in input dtype; cast in-kernel => no extra
    # HBM pad/cast pass over the big tensors) ---------------------------------
    if Lp != L or Bp != B:
        X3 = jnp.zeros((Bp, Lp, D), X.dtype).at[:B, :L, :].set(X)
        A3 = jnp.zeros((Bp, Lp, Lp), A.dtype).at[:B, :L, :L].set(A)
    else:
        X3, A3 = X, A
    x2d = X3.reshape(Bp * Lp, D)                # free (row-major) reshape

    args = [x2d, A3]
    if not share_w:
        w1p = jnp.zeros((D, Hp), cdt).at[:, :H].set(W1.astype(cdt))
        args.append(w1p)
    if have_w2:
        w2_src = W1 if share_w else W2
        w2p = jnp.zeros((Hp, Hp), cdt).at[:H, :H].set(w2_src.astype(cdt))
        args.append(w2p)
    b1p = jnp.zeros((1, Hp), jnp.float32).at[0, :H].set(b1.astype(jnp.float32))
    args.append(b1p)
    if have_b2:
        b2p = jnp.zeros((1, Hp), jnp.float32).at[0, :H].set(b2.astype(jnp.float32))
        args.append(b2p)

    # ---- specs / compiler params --------------------------------------------
    def build_in_specs(single_buffer_weights):
        def const_spec(shape):
            idx_map = lambda b: (0,) * len(shape)
            if single_buffer_weights:
                # grid-invariant weights/biases: one VMEM buffer is enough.
                return pl.BlockSpec(shape, idx_map, pipeline_mode=pl.Buffered(1))
            return pl.BlockSpec(shape, idx_map)

        specs = [pl.BlockSpec((R, D), lambda b: (b, 0)),             # X (flattened rows)
                 pl.BlockSpec((TB, Lp, Lp), lambda b: (b, 0, 0))]    # A
        if not share_w:
            specs.append(const_spec((D, Hp)))                        # W1
        if have_w2:
            specs.append(const_spec((Hp, Hp)))                       # W2 / shared W
        specs.append(const_spec((1, Hp)))                            # b1
        if have_b2:
            specs.append(const_spec((1, Hp)))                        # b2
        return specs

    flops = 0
    for s in range(step):
        if s == 0:
            flops += 2 * B * L * ((L * D + D * Hp) if ax_first else (D * Hp + L * Hp))
        else:
            flops += 2 * B * L * (Hp * Hp + L * Hp)
    bytes_accessed = sum(int(a.size) * a.dtype.itemsize for a in args) + Bp * Lp * Hp * o_isize
    cost = pl.CostEstimate(flops=int(flops), transcendentals=0,
                           bytes_accessed=int(bytes_accessed))

    vmem_est = _vmem_block_estimate(TB, Lp, D, Hp, x_isize, a_isize, o_isize, w_bytes, 2)
    compiler_kwargs = dict(dimension_semantics=("parallel",))
    if vmem_est > 16 * 1024 * 1024:
        # Raise the scoped-VMEM limit, capped per generation with headroom:
        # <= ~48-54 MiB on v7x (64 MiB), <= ~108 MiB on v5e/v6e (128 MiB).
        cap = min(int(0.85 * vmem_cap), vmem_cap - 16 * 1024 * 1024)
        compiler_kwargs["vmem_limit_bytes"] = int(min(max(vmem_est * 5 // 4,
                                                          32 * 1024 * 1024), cap))
    # TODO(synk): on v5e, if the profile shows the A-block DMA exposed, bump the
    # X/A specs to pipeline_mode=pl.Buffered(3) (lowest HBM bandwidth there).
    # TODO(synk): for very large Hp, add a second parallel grid axis tiling Hp so
    # the f32 intermediates do not spill through VMEM / the v5e store slot.

    kernel = make_gnn_kernel(step=step, D=D, Hp=Hp, TB=TB, Lp=Lp, share_w=share_w,
                             have_w2=have_w2, have_b2=have_b2,
                             use_block_diag=use_block_diag, ax_first=ax_first,
                             compute_dtype=cdt)

    def run(single_buffer_weights):
        return pl.pallas_call(
            kernel,
            out_shape=jax.ShapeDtypeStruct((Bp * Lp, Hp), out_dtype),
            grid_spec=pltpu.PrefetchScalarGridSpec(
                num_scalar_prefetch=0,
                grid=grid,
                in_specs=build_in_specs(single_buffer_weights),
                out_specs=pl.BlockSpec((R, Hp), lambda b: (b, 0)),
            ),
            compiler_params=pltpu.CompilerParams(**compiler_kwargs),
            cost_estimate=cost,
        )(*args)

    try:
        out2d = run(True)
    except Exception:
        # pl.Buffered(1) / pipeline_mode not supported here -> plain double-buffered specs.
        out2d = run(False)

    out3 = out2d.reshape(Bp, Lp, Hp)            # free reshape
    if Bp != B or Lp != L or Hp != H:
        # NOTE: this slice is one extra HBM pass over the output; callers that can
        # consume the (Bp, Lp, Hp) padded slab should take it directly instead.
        out3 = out3[:B, :L, :H]
    return out3


def init_gnn_params(key, input_dim, hidden_dim):
    """Mirror the module's parameter sharing:
    input_dim == hidden_dim: W2 is W1 (shared), b2 separate; else W2 separate, b2 is b1."""
    k1, k2, k3, k4 = jax.random.split(key, 4)
    W1 = jax.random.normal(k1, (input_dim, hidden_dim), jnp.float32) * 0.1
    b1 = jax.random.normal(k3, (hidden_dim,), jnp.float32) * 0.1
    if input_dim == hidden_dim:
        W2 = W1
        b2 = jax.random.normal(k4, (hidden_dim,), jnp.float32) * 0.1
    else:
        W2 = jax.random.normal(k2, (hidden_dim, hidden_dim), jnp.float32) * 0.1
        b2 = b1
    return W1, W2, b1, b2


def gnn_reference(X, A, W1, W2, b1, b2, *, step=2, compute_dtype=jnp.bfloat16):
    """Pure-JAX reference matching the PyTorch forward, with the same
    bf16-operand / f32-accumulation numerics (and step-0 matmul order) as the kernel."""
    B, L, D = X.shape
    H = W1.shape[1]
    Hp = max(128, _round_up(H, 128))
    ax_first = D < Hp
    x = X.astype(compute_dtype)
    a = A.astype(compute_dtype)
    for s in range(step):
        W = (W1 if s == 0 else W2).astype(compute_dtype)
        b = (b1 if s == 0 else b2).astype(jnp.float32)
        if s == 0 and ax_first:
            ax = jnp.einsum("blm,bmd->bld", a, x, preferred_element_type=jnp.float32)
            x = jnp.einsum("bld,dh->blh", ax.astype(compute_dtype), W,
                           preferred_element_type=jnp.float32)
        else:
            xw = jnp.einsum("bld,dh->blh", x, W, preferred_element_type=jnp.float32)
            x = jnp.einsum("blm,bmh->blh", a, xw.astype(compute_dtype),
                           preferred_element_type=jnp.float32)
        x = x + b
        if s < step - 1:
            x = jnp.maximum(x, 0.0)
            x = x.astype(compute_dtype)
    return x.astype(X.dtype)


if __name__ == "__main__":
    key = jax.random.PRNGKey(0)

    configs = [
        # (B, L, D_in, H)       kernel path exercised
        (2, 8, 16, 32),         # TB=1 direct matmul, (A@X)@W step-0 order
        (8, 8, 16, 32),         # TB>1 block-diagonal small-L path
        (4, 8, 32, 32),         # shared W2 == W1 (input_dim == hidden_dim)
        (3, 6, 16, 40),         # odd batch, L % 8 != 0 -> padded rows
        (8, 24, 256, 32),       # TB>1 batched-einsum path, X@W-first order
    ]
    for i, (B, L, D_in, H) in enumerate(configs):
        kx, ka, kp, key = jax.random.split(key, 4)
        X = jax.random.normal(kx, (B, L, D_in), jnp.float32)
        # non-negative adjacency-like matrix
        A = jax.nn.softmax(jax.random.normal(ka, (B, L, L), jnp.float32), axis=-1)
        W1, W2, b1, b2 = init_gnn_params(kp, D_in, H)

        out = jax.block_until_ready(gnn_forward(X, A, W1, W2, b1, b2, step=2))
        ref = gnn_reference(X, A, W1, W2, b1, b2, step=2)
        assert out.shape == (B, L, H)
        err = float(jnp.max(jnp.abs(out - ref)))
        assert jnp.allclose(out, ref, atol=2e-3, rtol=2e-3), (
            f"config {i} {B, L, D_in, H} mismatch vs reference: max abs err {err:.3e}")

    print("KERNEL_OK")
</pallas_src>

<mosaic_0001>
module attributes {stable_mosaic.version = 11 : i64} {
  func.func @kernel(%arg0: i32, %arg1: memref<8x16xf32, #tpu.memory_space<vmem>>, %arg2: memref<1x8x8xf32, #tpu.memory_space<vmem>>, %arg3: memref<16x128xbf16, #tpu.memory_space<vmem>>, %arg4: memref<128x128xbf16, #tpu.memory_space<vmem>>, %arg5: memref<1x128xf32, #tpu.memory_space<vmem>>, %arg6: memref<8x128xf32, #tpu.memory_space<vmem>>) attributes {dimension_semantics = [#tpu.dimension_semantics<parallel>], iteration_bounds = array<i64: 2>, scalar_prefetch = 0 : i64, scratch_operands = 0 : i64, tpu.core_type = #tpu.core_type<tc>, window_params = [{transform_indices = @transform_0, window_bounds = array<i64: 8, 16>}, {transform_indices = @transform_1, window_bounds = array<i64: 1, 8, 8>}, {pipeline_mode = #tpu.pipeline_mode<synchronous>, transform_indices = @transform_2, window_bounds = array<i64: 16, 128>}, {pipeline_mode = #tpu.pipeline_mode<synchronous>, transform_indices = @transform_3, window_bounds = array<i64: 128, 128>}, {pipeline_mode = #tpu.pipeline_mode<synchronous>, transform_indices = @transform_4, window_bounds = array<i64: 1, 128>}, {transform_indices = @transform_5, window_bounds = array<i64: 8, 128>}]} {
    %c0 = arith.constant 0 : index
    %c0_0 = arith.constant 0 : index
    %0 = vector.load %arg1[%c0, %c0_0] : memref<8x16xf32, #tpu.memory_space<vmem>>, vector<8x16xf32>
    %1 = arith.truncf %0 : vector<8x16xf32> to vector<8x16xbf16>
    %c0_1 = arith.constant 0 : index
    %c0_2 = arith.constant 0 : index
    %c0_3 = arith.constant 0 : index
    %2 = vector.load %arg2[%c0_1, %c0_2, %c0_3] : memref<1x8x8xf32, #tpu.memory_space<vmem>>, vector<1x8x8xf32>
    %3 = arith.truncf %2 : vector<1x8x8xf32> to vector<1x8x8xbf16>
    %4 = vector.shape_cast %3 : vector<1x8x8xbf16> to vector<8x8xbf16>
    %c0_4 = arith.constant 0 : index
    %c0_5 = arith.constant 0 : index
    %5 = vector.load %arg3[%c0_4, %c0_5] : memref<16x128xbf16, #tpu.memory_space<vmem>>, vector<16x128xbf16>
    %c0_6 = arith.constant 0 : index
    %c0_7 = arith.constant 0 : index
    %6 = vector.load %arg5[%c0_6, %c0_7] : memref<1x128xf32, #tpu.memory_space<vmem>>, vector<1x128xf32>
    %cst = arith.constant dense<0.000000e+00> : vector<8x16xf32>
    %7 = tpu.matmul %4, %1, %cst {dimension_numbers = #tpu.dot_dimension_numbers<[1], [0], [0], [1], [0, 0, 1, 1], [], []>} : vector<8x8xbf16>, vector<8x16xbf16>, vector<8x16xf32> -> vector<8x16xf32>
    %8 = arith.truncf %7 : vector<8x16xf32> to vector<8x16xbf16>
    %cst_8 = arith.constant dense<0.000000e+00> : vector<8x128xf32>
    %9 = tpu.matmul %8, %5, %cst_8 {dimension_numbers = #tpu.dot_dimension_numbers<[1], [0], [0], [1], [0, 0, 1, 1], [], []>} : vector<8x16xbf16>, vector<16x128xbf16>, vector<8x128xf32> -> vector<8x128xf32>
    %10 = vector.broadcast %6 : vector<1x128xf32> to vector<8x128xf32>
    %11 = arith.addf %9, %10 : vector<8x128xf32>
    %cst_9 = arith.constant 0.000000e+00 : f32
    %12 = vector.broadcast %cst_9 : f32 to vector<8x128xf32>
    %13 = arith.maximumf %11, %12 : vector<8x128xf32>
    %14 = arith.truncf %13 : vector<8x128xf32> to vector<8x128xbf16>
    %c0_10 = arith.constant 0 : index
    %c0_11 = arith.constant 0 : index
    %15 = vector.load %arg4[%c0_10, %c0_11] : memref<128x128xbf16, #tpu.memory_space<vmem>>, vector<128x128xbf16>
    %c0_12 = arith.constant 0 : index
    %c0_13 = arith.constant 0 : index
    %16 = vector.load %arg5[%c0_12, %c0_13] : memref<1x128xf32, #tpu.memory_space<vmem>>, vector<1x128xf32>
    %cst_14 = arith.constant dense<0.000000e+00> : vector<8x128xf32>
    %17 = tpu.matmul %14, %15, %cst_14 {dimension_numbers = #tpu.dot_dimension_numbers<[1], [0], [0], [1], [0, 0, 1, 1], [], []>} : vector<8x128xbf16>, vector<128x128xbf16>, vector<8x128xf32> -> vector<8x128xf32>
    %18 = arith.truncf %17 : vector<8x128xf32> to vector<8x128xbf16>
    %cst_15 = arith.constant dense<0.000000e+00> : vector<8x128xf32>
    %19 = tpu.matmul %4, %18, %cst_15 {dimension_numbers = #tpu.dot_dimension_numbers<[1], [0], [0], [1], [0, 0, 1, 1], [], []>} : vector<8x8xbf16>, vector<8x128xbf16>, vector<8x128xf32> -> vector<8x128xf32>
    %20 = vector.broadcast %16 : vector<1x128xf32> to vector<8x128xf32>
    %21 = arith.addf %19, %20 : vector<8x128xf32>
    %c0_16 = arith.constant 0 : index
    %c0_17 = arith.constant 0 : index
    %22 = vector.load %arg6[%c0_16, %c0_17] : memref<8x128xf32, #tpu.memory_space<vmem>>, vector<8x128xf32>
    tpu.vector_store %arg6[%c0_16, %c0_17], %21 {strides = array<i32>} : memref<8x128xf32, #tpu.memory_space<vmem>>, vector<8x128xf32>,
    return
  }
  func.func @transform_0(%arg0: i32) -> (i32, i32) {
    %c0_i32 = arith.constant 0 : i32
    %c0_i32_0 = arith.constant 0 : i32
    return %arg0, %c0_i32 : i32, i32
  }
  func.func @transform_1(%arg0: i32) -> (i32, i32, i32) {
    %c0_i32 = arith.constant 0 : i32
    %c0_i32_0 = arith.constant 0 : i32
    %c0_i32_1 = arith.constant 0 : i32
    return %arg0, %c0_i32, %c0_i32_0 : i32, i32, i32
  }
  func.func @transform_2(%arg0: i32) -> (i32, i32) {
    %c0_i32 = arith.constant 0 : i32
    %c0_i32_0 = arith.constant 0 : i32
    %c0_i32_1 = arith.constant 0 : i32
    return %c0_i32, %c0_i32_0 : i32, i32
  }
  func.func @transform_3(%arg0: i32) -> (i32, i32) {
    %c0_i32 = arith.constant 0 : i32
    %c0_i32_0 = arith.constant 0 : i32
    %c0_i32_1 = arith.constant 0 : i32
    return %c0_i32, %c0_i32_0 : i32, i32
  }
  func.func @transform_4(%arg0: i32) -> (i32, i32) {
    %c0_i32 = arith.constant 0 : i32
    %c0_i32_0 = arith.constant 0 : i32
    %c0_i32_1 = arith.constant 0 : i32
    return %c0_i32, %c0_i32_0 : i32, i32
  }
  func.func @transform_5(%arg0: i32) -> (i32, i32) {
    %c0_i32 = arith.constant 0 : i32
    %c0_i32_0 = arith.constant 0 : i32
    return %arg0, %c0_i32 : i32, i32
  }
}

module attributes {stable_mosaic.version = 11 : i64} {
  func.func @kernel(%arg0: i32, %arg1: memref<8x16xf32, #tpu.memory_space<vmem>>, %arg2: memref<1x8x8xf32, #tpu.memory_space<vmem>>, %arg3: memref<16x128xbf16, #tpu.memory_space<vmem>>, %arg4: memref<128x128xbf16, #tpu.memory_space<vmem>>, %arg5: memref<1x128xf32, #tpu.memory_space<vmem>>, %arg6: memref<8x128xf32, #tpu.memory_space<vmem>>) attributes {dimension_semantics = [#tpu.dimension_semantics<parallel>], iteration_bounds = array<i64: 2>, scalar_prefetch = 0 : i64, scratch_operands = 0 : i64, tpu.core_type = #tpu.core_type<tc>, window_params = [{transform_indices = @transform_0, window_bounds = array<i64: 8, 16>}, {transform_indices = @transform_1, window_bounds = array<i64: 1, 8, 8>}, {pipeline_mode = #tpu.pipeline_mode<synchronous>, transform_indices = @transform_2, window_bounds = array<i64: 16, 128>}, {pipeline_mode = #tpu.pipeline_mode<synchronous>, transform_indices = @transform_3, window_bounds = array<i64: 128, 128>}, {pipeline_mode = #tpu.pipeline_mode<synchronous>, transform_indices = @transform_4, window_bounds = array<i64: 1, 128>}, {transform_indices = @transform_5, window_bounds = array<i64: 8, 128>}]} {
    %c0 = arith.constant 0 : index
    %c0_0 = arith.constant 0 : index
    %0 = vector.load %arg1[%c0, %c0_0] : memref<8x16xf32, #tpu.memory_space<vmem>>, vector<8x16xf32>
    %1 = arith.truncf %0 : vector<8x16xf32> to vector<8x16xbf16>
    %c0_1 = arith.constant 0 : index
    %c0_2 = arith.constant 0 : index
    %c0_3 = arith.constant 0 : index
    %2 = vector.load %arg2[%c0_1, %c0_2, %c0_3] : memref<1x8x8xf32, #tpu.memory_space<vmem>>, vector<1x8x8xf32>
    %3 = arith.truncf %2 : vector<1x8x8xf32> to vector<1x8x8xbf16>
    %4 = vector.shape_cast %3 : vector<1x8x8xbf16> to vector<8x8xbf16>
    %c0_4 = arith.constant 0 : index
    %c0_5 = arith.constant 0 : index
    %5 = vector.load %arg3[%c0_4, %c0_5] : memref<16x128xbf16, #tpu.memory_space<vmem>>, vector<16x128xbf16>
    %c0_6 = arith.constant 0 : index
    %c0_7 = arith.constant 0 : index
    %6 = vector.load %arg5[%c0_6, %c0_7] : memref<1x128xf32, #tpu.memory_space<vmem>>, vector<1x128xf32>
    %cst = arith.constant dense<0.000000e+00> : vector<8x16xf32>
    %7 = tpu.matmul %4, %1, %cst {dimension_numbers = #tpu.dot_dimension_numbers<[1], [0], [0], [1], [0, 0, 1, 1], [], []>} : vector<8x8xbf16>, vector<8x16xbf16>, vector<8x16xf32> -> vector<8x16xf32>
    %8 = arith.truncf %7 : vector<8x16xf32> to vector<8x16xbf16>
    %cst_8 = arith.constant dense<0.000000e+00> : vector<8x128xf32>
    %9 = tpu.matmul %8, %5, %cst_8 {dimension_numbers = #tpu.dot_dimension_numbers<[1], [0], [0], [1], [0, 0, 1, 1], [], []>} : vector<8x16xbf16>, vector<16x128xbf16>, vector<8x128xf32> -> vector<8x128xf32>
    %10 = vector.broadcast %6 : vector<1x128xf32> to vector<8x128xf32>
    %11 = arith.addf %9, %10 : vector<8x128xf32>
    %cst_9 = arith.constant 0.000000e+00 : f32
    %12 = vector.broadcast %cst_9 : f32 to vector<8x128xf32>
    %13 = arith.maximumf %11, %12 : vector<8x128xf32>
    %14 = arith.truncf %13 : vector<8x128xf32> to vector<8x128xbf16>
    %c0_10 = arith.constant 0 : index
    %c0_11 = arith.constant 0 : index
    %15 = vector.load %arg4[%c0_10, %c0_11] : memref<128x128xbf16, #tpu.memory_space<vmem>>, vector<128x128xbf16>
    %c0_12 = arith.constant 0 : index
    %c0_13 = arith.constant 0 : index
    %16 = vector.load %arg5[%c0_12, %c0_13] : memref<1x128xf32, #tpu.memory_space<vmem>>, vector<1x128xf32>
    %cst_14 = arith.constant dense<0.000000e+00> : vector<8x128xf32>
    %17 = tpu.matmul %14, %15, %cst_14 {dimension_numbers = #tpu.dot_dimension_numbers<[1], [0], [0], [1], [0, 0, 1, 1], [], []>} : vector<8x128xbf16>, vector<128x128xbf16>, vector<8x128xf32> -> vector<8x128xf32>
    %18 = arith.truncf %17 : vector<8x128xf32> to vector<8x128xbf16>
    %cst_15 = arith.constant dense<0.000000e+00> : vector<8x128xf32>
    %19 = tpu.matmul %4, %18, %cst_15 {dimension_numbers = #tpu.dot_dimension_numbers<[1], [0], [0], [1], [0, 0, 1, 1], [], []>} : vector<8x8xbf16>, vector<8x128xbf16>, vector<8x128xf32> -> vector<8x128xf32>
    %20 = vector.broadcast %16 : vector<1x128xf32> to vector<8x128xf32>
    %21 = arith.addf %19, %20 : vector<8x128xf32>
    %c0_16 = arith.constant 0 : index
    %c0_17 = arith.constant 0 : index
    %22 = vector.load %arg6[%c0_16, %c0_17] : memref<8x128xf32, #tpu.memory_space<vmem>>, vector<8x128xf32>
    tpu.vector_store %arg6[%c0_16, %c0_17], %21 {strides = array<i32>} : memref<8x128xf32, #tpu.memory_space<vmem>>, vector<8x128xf32>,
    return
  }
  func.func @transform_0(%arg0: i32) -> (i32, i32) {
    %c0_i32 = arith.constant 0 : i32
    %c0_i32_0 = arith.constant 0 : i32
    return %arg0, %c0_i32 : i32, i32
  }
  func.func @transform_1(%arg0: i32) -> (i32, i32, i32) {
    %c0_i32 = arith.constant 0 : i32
    %c0_i32_0 = arith.constant 0 : i32
    %c0_i32_1 = arith.constant 0 : i32
    return %arg0, %c0_i32, %c0_i32_0 : i32, i32, i32
  }
  func.func @transform_2(%arg0: i32) -> (i32, i32) {
    %c0_i32 = arith.constant 0 : i32
    %c0_i32_0 = arith.constant 0 : i32
    %c0_i32_1 = arith.constant 0 : i32
    return %c0_i32, %c0_i32_0 : i32, i32
  }
  func.func @transform_3(%arg0: i32) -> (i32, i32) {
    %c0_i32 = arith.constant 0 : i32
    %c0_i32_0 = arith.constant 0 : i32
    %c0_i32_1 = arith.constant 0 : i32
    return %c0_i32, %c0_i32_0 : i32, i32
  }
  func.func @transform_4(%arg0: i32) -> (i32, i32) {
    %c0_i32 = arith.constant 0 : i32
    %c0_i32_0 = arith.constant 0 : i32
    %c0_i32_1 = arith.constant 0 : i32
    return %c0_i32, %c0_i32_0 : i32, i32
  }
  func.func @transform_5(%arg0: i32) -> (i32, i32) {
    %c0_i32 = arith.constant 0 : i32
    %c0_i32_0 = arith.constant 0 : i32
    return %arg0, %c0_i32 : i32, i32
  }
}

</mosaic_0001>

<llo_original>
// kernel: tpu_custom_call.1
$region0: #{tpu_custom_call.1}
  #allocation0 [shape = 'u32[]', space=smem, size = 0x4, offset = 0x4, fixed_abs, tag = 'smem constant byte address 0x4 - core index']
  #allocation1 [shape = 'u32[144,128]{1,0:T(1,128)}', space=vmem, size = 0x12000, scoped, tag = 'internal scratch']
  %s0 = inlined_call_operand.hbm [shape: f32[16,16], index: 0, kind: input, shape index: {}]
  %s1 = inlined_call_operand.hbm [shape: f32[2,8,8], index: 1, kind: input, shape index: {}]
  %s2 = inlined_call_operand.hbm [shape: bf16[16,128], index: 2, kind: input, shape index: {}]
  %s3 = inlined_call_operand.hbm [shape: bf16[128,128], index: 3, kind: input, shape index: {}]
  %s4 = inlined_call_operand.vmem [shape: f32[1,128], index: 4, kind: input, shape index: {}]
  %s5 = inlined_call_operand.hbm [shape: f32[16,128], index: 5, kind: output, shape index: {}]
  %s6 = sld [smem:[#allocation0]]
  $region69: #{tpu_custom_call.1} parent=0
    _
  %s8 = ssub.s32 1, %s6
  %s9 = scalar_select 0, %s8, %s6
  $region1: #{tpu_custom_call.1} parent=0
    #allocation2 [shape = 'u8[8192]{0}', space=vmem, size = 0x2000, scoped, tag = 'input window, operand 0']
    #allocation3 [shape = 's32[2]{0}', space=sflag, size = 0x8, scoped, tag = 'scoped memory for tpu_custom_call.1']
    #allocation4 [shape = 's32[2]{0}', space=sflag, size = 0x8, scoped, tag = 'scoped memory for tpu_custom_call.1']
    #allocation5 [shape = 'u8[8192]{0}', space=vmem, size = 0x2000, scoped, tag = 'input window, operand 1']
    #allocation6 [shape = 's32[2]{0}', space=sflag, size = 0x8, scoped, tag = 'scoped memory for tpu_custom_call.1']
    #allocation7 [shape = 'u8[4096]{0}', space=vmem, size = 0x1000, scoped, tag = 'input window, operand 2, single buffered']
    #allocation8 [shape = 'u8[32768]{0}', space=vmem, size = 0x8000, scoped, tag = 'input window, operand 3, single buffered']
    #allocation9 [shape = 's32[1]{0}', space=sflag, size = 0x4, scoped, tag = 'scoped memory for tpu_custom_call.1']
    #allocation10 [shape = 'u8[8192]{0}', space=vmem, size = 0x2000, scoped, tag = 'output window, operand 0']
    %10 = vsyncpa [#allocation3], 0
    %s11 = scalar_lea.sflag [#allocation3], 1
    %12 = vsyncpa %s11, 0
    %13 = vsyncpa [#allocation6], 0
    %s14 = scalar_lea.sflag [#allocation6], 1
    %15 = vsyncpa %s14, 0
    %16 = vsyncpa [#allocation9], 0
    %17 = vsyncpa [#allocation4], 0
    %s18 = scalar_lea.sflag [#allocation4], 1
    %19 = vsyncpa %s18, 0
    loop: start=0, step=1, limit=4
    $region2: #{tpu_custom_call.1} parent=1 // loop_pre_header
      _
    $region3: #{tpu_custom_call.1} parent=1 // loop_header
      %s21 = sphi 0, %s25
      %p22 = scmp.ge.s32.totalorder %s21, 4
      %s31 = sphi 0, %s33
      %s34 = sphi 0, %s31
      %s35 = sphi 0, %s34
      %s51 = sphi 0, %s35
      %s57 = sphi 0, %s59
      %s60 = sphi 0, %s57
      %s61 = sphi 0, %s60
      %s77 = sphi 0, %s61
      %s81 = sphi 0, %s81
      %s83 = sphi 0, %s81
      %s84 = sphi 0, %s83
      %s98 = sphi 0, %s84
      %s102 = sphi 0, %s102
      %s104 = sphi 0, %s102
      %s105 = sphi 0, %s104
      %s119 = sphi 0, %s105
      %s123 = sphi 0, %s123
      %s125 = sphi 0, %s123
      %s126 = sphi 0, %s125
      %s140 = sphi 0, %s126
      %s146 = sphi 0, %s148
      %s149 = sphi 0, %s146
      %s150 = sphi 0, %s149
      %s166 = sphi 0, %s150
    $region4: #{tpu_custom_call.1} parent=1 // loop_header_branch
      %24 = sbr.rel (%p22) target = $region8
    $region5: #{tpu_custom_call.1} parent=1 // loop_body
      %s26 = ssub.s32 %s21, 1
      %s27 = ssub.s32 %s21, 2
      %s28 = sadd.s32 %s21, 1
      %s29 = ssub.s32 %s21, %s28
      %p30 = scmp.eq.s32.totalorder %s29, 0
      %s32 = sadd.s32 %s31, 1
      %s33 = scalar_select %p30, %s31, %s32
      %p36 = pneg %p30
      %p37 = scmp.eq.s32.totalorder %s21, 1
      %p38 = por %p36, %p37
      %p39 = scmp.ne.s32.totalorder %s31, %s34
      %p40 = scmp.eq.s32.totalorder %s21, 0
      %p41 = por %p39, %p40
      %p42 = scmp.ne.s32.totalorder %s31, %s34
      %p43 = scmp.eq.s32.totalorder %s26, 1
      %p44 = por %p42, %p43
      %p45 = scmp.ne.s32.totalorder %s34, %s35
      %p46 = scmp.eq.s32.totalorder %s26, 0
      %p47 = por %p45, %p46
      %p48 = scmp.ne.s32.totalorder %s34, %s35
      %p49 = scmp.eq.s32.totalorder %s27, 1
      %p50 = por %p48, %p49
      %p52 = scmp.ne.s32.totalorder %s35, %s51
      %p53 = scmp.eq.s32.totalorder %s27, 0
      %p54 = por %p52, %p53
      %s55 = ssub.s32 %s21, %s28
      %p56 = scmp.eq.s32.totalorder %s55, 0
      %s58 = sadd.s32 %s57, 1
      %s59 = scalar_select %p56, %s57, %s58
      %p62 = pneg %p56
      %p63 = scmp.eq.s32.totalorder %s21, 1
      %p64 = por %p62, %p63
      %p65 = scmp.ne.s32.totalorder %s57, %s60
      %p66 = scmp.eq.s32.totalorder %s21, 0
      %p67 = por %p65, %p66
      %p68 = scmp.ne.s32.totalorder %s57, %s60
      %p69 = scmp.eq.s32.totalorder %s26, 1
      %p70 = por %p68, %p69
      %p71 = scmp.ne.s32.totalorder %s60, %s61
      %p72 = scmp.eq.s32.totalorder %s26, 0
      %p73 = por %p71, %p72
      %p74 = scmp.ne.s32.totalorder %s60, %s61
      %p75 = scmp.eq.s32.totalorder %s27, 1
      %p76 = por %p74, %p75
      %p78 = scmp.ne.s32.totalorder %s61, %s77
      %p79 = scmp.eq.s32.totalorder %s27, 0
      %p80 = por %p78, %p79
      %s82 = sadd.s32 %s81, 1
      %p85 = scmp.eq.s32.totalorder %s21, 1
      %p86 = scmp.ne.s32.totalorder %s81, %s83
      %p87 = scmp.eq.s32.totalorder %s21, 0
      %p88 = por %p86, %p87
      %p89 = scmp.ne.s32.totalorder %s81, %s83
      %p90 = scmp.eq.s32.totalorder %s26, 1
      %p91 = por %p89, %p90
      %p92 = scmp.ne.s32.totalorder %s83, %s84
      %p93 = scmp.eq.s32.totalorder %s26, 0
      %p94 = por %p92, %p93
      %p95 = scmp.ne.s32.totalorder %s83, %s84
      %p96 = scmp.eq.s32.totalorder %s27, 1
      %p97 = por %p95, %p96
      %p99 = scmp.ne.s32.totalorder %s84, %s98
      %p100 = scmp.eq.s32.totalorder %s27, 0
      %p101 = por %p99, %p100
      %s103 = sadd.s32 %s102, 1
      %p106 = scmp.eq.s32.totalorder %s21, 1
      %p107 = scmp.ne.s32.totalorder %s102, %s104
      %p108 = scmp.eq.s32.totalorder %s21, 0
      %p109 = por %p107, %p108
      %p110 = scmp.ne.s32.totalorder %s102, %s104
      %p111 = scmp.eq.s32.totalorder %s26, 1
      %p112 = por %p110, %p111
      %p113 = scmp.ne.s32.totalorder %s104, %s105
      %p114 = scmp.eq.s32.totalorder %s26, 0
      %p115 = por %p113, %p114
      %p116 = scmp.ne.s32.totalorder %s104, %s105
      %p117 = scmp.eq.s32.totalorder %s27, 1
      %p118 = por %p116, %p117
      %p120 = scmp.ne.s32.totalorder %s105, %s119
      %p121 = scmp.eq.s32.totalorder %s27, 0
      %p122 = por %p120, %p121
      %s124 = sadd.s32 %s123, 1
      %p127 = scmp.eq.s32.totalorder %s21, 1
      %p128 = scmp.ne.s32.totalorder %s123, %s125
      %p129 = scmp.eq.s32.totalorder %s21, 0
      %p130 = por %p128, %p129
      %p131 = scmp.ne.s32.totalorder %s123, %s125
      %p132 = scmp.eq.s32.totalorder %s26, 1
      %p133 = por %p131, %p132
      %p134 = scmp.ne.s32.totalorder %s125, %s126
      %p135 = scmp.eq.s32.totalorder %s26, 0
      %p136 = por %p134, %p135
      %p137 = scmp.ne.s32.totalorder %s125, %s126
      %p138 = scmp.eq.s32.totalorder %s27, 1
      %p139 = por %p137, %p138
      %p141 = scmp.ne.s32.totalorder %s126, %s140
      %p142 = scmp.eq.s32.totalorder %s27, 0
      %p143 = por %p141, %p142
      %s144 = ssub.s32 %s21, %s28
      %p145 = scmp.eq.s32.totalorder %s144, 0
      %s147 = sadd.s32 %s146, 1
      %s148 = scalar_select %p145, %s146, %s147
      %p151 = pneg %p145
      %p152 = scmp.eq.s32.totalorder %s21, 1
      %p153 = por %p151, %p152
      %p154 = scmp.ne.s32.totalorder %s146, %s149
      %p155 = scmp.eq.s32.totalorder %s21, 0
      %p156 = por %p154, %p155
      %p157 = scmp.ne.s32.totalorder %s146, %s149
      %p158 = scmp.eq.s32.totalorder %s26, 1
      %p159 = por %p157, %p158
      %p160 = scmp.ne.s32.totalorder %s149, %s150
      %p161 = scmp.eq.s32.totalorder %s26, 0
      %p162 = por %p160, %p161
      %p163 = scmp.ne.s32.totalorder %s149, %s150
      %p164 = scmp.eq.s32.totalorder %s27, 1
      %p165 = por %p163, %p164
      %p167 = scmp.ne.s32.totalorder %s150, %s166
      %p168 = scmp.eq.s32.totalorder %s27, 0
      %p169 = por %p167, %p168
      %p170 = scmp.le.s32.totalorder 1, %s21
      %p171 = scmp.lt.s32.totalorder %s21, 3
      %p172 = pnand %p170, %p171
      %p173 = pneg %p172
      // Predicated region
      $region9: #{tpu_custom_call.1} parent=5 // pred_check
        _
      $region10: #{tpu_custom_call.1} parent=5 // pred_check_branch
        %175 = sbr.rel (%p172) target = $region12
      $region11: #{tpu_custom_call.1} parent=5 // pred_region
        %s176 = ssub.s32 %s21, 1
        // Predicated region
        $region13: #{tpu_custom_call.1} parent=11 // pred_check
          %p177 = pneg %p94
        $region14: #{tpu_custom_call.1} parent=11 // pred_check_branch
          %179 = sbr.rel (%p177) target = $region16
        $region15: #{tpu_custom_call.1} parent=11 // pred_region
          %s181 = ssub.s32 128, 128
          %182 = vsyncadd [#allocation6], %s181
          %s183 = sshll.u32 [#allocation7], 4
          %s184 = int_to_ptr.vmem [resolvable:$true] %s183
          %189 = dma.hbm_to_vmem [thread:$0]  %s2, 128, %s184, [#allocation6], 64, 64, 4
        $region16: #{tpu_custom_call.1} parent=11 // pred_fallthru
          _
        // Predicated region
        $region17: #{tpu_custom_call.1} parent=11 // pred_check
          %p190 = pneg %p115
        $region18: #{tpu_custom_call.1} parent=11 // pred_check_branch
          %192 = sbr.rel (%p190) target = $region20
        $region19: #{tpu_custom_call.1} parent=11 // pred_region
          %s194 = ssub.s32 1024, 1024
          %195 = vsyncadd [#allocation9], %s194
          %s196 = sshll.u32 [#allocation8], 4
          %s197 = int_to_ptr.vmem [resolvable:$true] %s196
          %202 = dma.hbm_to_vmem [thread:$0]  %s3, 1024, %s197, [#allocation9], 64, 64, 4
        $region20: #{tpu_custom_call.1} parent=11 // pred_fallthru
          _
        // Predicated region
        $region21: #{tpu_custom_call.1} parent=11 // pred_check
          %p203 = pneg %p136
        $region22: #{tpu_custom_call.1} parent=11 // pred_check_branch
          %205 = sbr.rel (%p203) target = $region24
        $region23: #{tpu_custom_call.1} parent=11 // pred_region
          _
        $region24: #{tpu_custom_call.1} parent=11 // pred_fallthru
          _
      $region12: #{tpu_custom_call.1} parent=5 // pred_fallthru
        _
      %p206 = scmp.lt.s32.totalorder %s21, 2
      // Predicated region
      $region25: #{tpu_custom_call.1} parent=5 // pred_check
        %p207 = pneg %p206
      $region26: #{tpu_custom_call.1} parent=5 // pred_check_branch
        %209 = sbr.rel (%p207) target = $region28
      $region27: #{tpu_custom_call.1} parent=5 // pred_region
        // Predicated region
        $region29: #{tpu_custom_call.1} parent=27 // pred_check
          %p210 = pneg %p41
        $region30: #{tpu_custom_call.1} parent=27 // pred_check_branch
          %212 = sbr.rel (%p210) target = $region32
        $region31: #{tpu_custom_call.1} parent=27 // pred_region
          %s213 = sand.u32 %s31, 1
          %s214 = scalar_lea.sflag [#allocation3], %s213
          %s215 = sand.u32 %s31, 1
          %s216 = smul.addr %s215, 8
          %s217 = scalar_lea.vmem [#allocation2], %s216
          %s219 = ssub.s32 128, 128
          %220 = vsyncadd %s214, %s219
          %s221 = smul.addr %s21, 128
          %s222 = scalar_lea.hbm %s0, %s221
          %s224 = sshll.u32 %s217, 4
          %s225 = int_to_ptr.vmem [resolvable:$true] %s224
          %227 = dma.hbm_to_vmem [thread:$0]  %s222, 128, %s225, %s214
        $region32: #{tpu_custom_call.1} parent=27 // pred_fallthru
          _
        // Predicated region
        $region33: #{tpu_custom_call.1} parent=27 // pred_check
          %p228 = pneg %p67
        $region34: #{tpu_custom_call.1} parent=27 // pred_check_branch
          %230 = sbr.rel (%p228) target = $region36
        $region35: #{tpu_custom_call.1} parent=27 // pred_region
          %s231 = sand.u32 %s21, 1
          %s232 = scalar_lea.sflag [#allocation6], %s231
          %s233 = sand.u32 %s57, 1
          %s234 = smul.addr %s233, 8
          %s235 = scalar_lea.vmem [#allocation5], %s234
          %s237 = ssub.s32 128, 128
          %238 = vsyncadd %s232, %s237
          %s239 = smul.addr %s21, 128
          %s240 = scalar_lea.hbm %s1, %s239
          %s242 = sshll.u32 %s235, 4
          %s243 = int_to_ptr.vmem [resolvable:$true] %s242
          %245 = dma.hbm_to_vmem [thread:$0]  %s240, 128, %s243, %s232
        $region36: #{tpu_custom_call.1} parent=27 // pred_fallthru
          _
      $region28: #{tpu_custom_call.1} parent=5 // pred_fallthru
        _
      %p246 = scmp.le.s32.totalorder 1, %s21
      %p247 = scmp.lt.s32.totalorder %s21, 3
      %p248 = pnand %p246, %p247
      %p249 = pneg %p248
      // Predicated region
      $region37: #{tpu_custom_call.1} parent=5 // pred_check
        _
      $region38: #{tpu_custom_call.1} parent=5 // pred_check_branch
        %251 = sbr.rel (%p248) target = $region40
      $region39: #{tpu_custom_call.1} parent=5 // pred_region
        %s252 = ssub.s32 %s21, 1
        %s253 = sand.u32 %s34, 1
        %s254 = scalar_lea.sflag [#allocation3], %s253
        %s255 = sand.u32 %s34, 1
        %s256 = smul.addr %s255, 8
        %s257 = scalar_lea.vmem [#allocation2], %s256
        // Predicated region
        $region41: #{tpu_custom_call.1} parent=39 // pred_check
          %p258 = pneg %p47
        $region42: #{tpu_custom_call.1} parent=39 // pred_check_branch
          %260 = sbr.rel (%p258) target = $region44
        $region43: #{tpu_custom_call.1} parent=39 // pred_region
          %261 = dma.done %s254, 128
        $region44: #{tpu_custom_call.1} parent=39 // pred_fallthru
          _
        %s262 = sand.u32 %s26, 1
        %s263 = scalar_lea.sflag [#allocation6], %s262
        %s264 = sand.u32 %s60, 1
        %s265 = smul.addr %s264, 8
        %s266 = scalar_lea.vmem [#allocation5], %s265
        // Predicated region
        $region45: #{tpu_custom_call.1} parent=39 // pred_check
          %p267 = pneg %p73
        $region46: #{tpu_custom_call.1} parent=39 // pred_check_branch
          %269 = sbr.rel (%p267) target = $region48
        $region47: #{tpu_custom_call.1} parent=39 // pred_region
          %270 = dma.done %s263, 128
        $region48: #{tpu_custom_call.1} parent=39 // pred_fallthru
          _
        // Predicated region
        $region49: #{tpu_custom_call.1} parent=39 // pred_check
          %p271 = pneg %p94
        $region50: #{tpu_custom_call.1} parent=39 // pred_check_branch
          %273 = sbr.rel (%p271) target = $region52
        $region51: #{tpu_custom_call.1} parent=39 // pred_region
          %274 = dma.done [#allocation6], 128
        $region52: #{tpu_custom_call.1} parent=39 // pred_fallthru
          _
        // Predicated region
        $region53: #{tpu_custom_call.1} parent=39 // pred_check
          %p275 = pneg %p115
        $region54: #{tpu_custom_call.1} parent=39 // pred_check_branch
          %277 = sbr.rel (%p275) target = $region56
        $region55: #{tpu_custom_call.1} parent=39 // pred_region
          %278 = dma.done [#allocation9], 1024
        $region56: #{tpu_custom_call.1} parent=39 // pred_fallthru
          _
        %s279 = sand.u32 %s34, 1
        %s280 = scalar_lea.sflag [#allocation3], %s279
        %s281 = sand.u32 %s34, 1
        %s282 = smul.addr %s281, 8
        %s283 = scalar_lea.vmem [#allocation2], %s282
        %p284 = pneg %p47
        %p285 = pneg %p44
        %s286 = sand.u32 %s26, 1
        %s287 = scalar_lea.sflag [#allocation6], %s286
        %s288 = sand.u32 %s60, 1
        %s289 = smul.addr %s288, 8
        %s290 = scalar_lea.vmem [#allocation5], %s289
        %p291 = pneg %p73
        %p292 = pneg %p70
        %p293 = pneg %p94
        %p294 = pneg %p91
        %p295 = pneg %p115
        %p296 = pneg %p112
        %p297 = pneg %p136
        %p298 = pneg %p133
        %p299 = pneg %p162
        %p300 = pneg %p159
        %s301 = sand.u32 %s149, 1
        %s302 = scalar_lea.sflag [#allocation4], %s301
        %s303 = sand.u32 %s149, 1
        %s304 = smul.addr %s303, 8
        %s305 = scalar_lea.vmem [#allocation10], %s304
        %v307 = vld [vmem:[%s257] sm:$0xff]
        %v308 = vpack.c.bf16 %v307, %v307
        %v309 = vld [vmem:[%s266] sm:$0xff]
        %v310 = vpack.c.bf16 %v309, %v309
        %v311 = vld [vmem:[#allocation7] sm:$0xf]
        %v312 = vld [vmem:[#allocation7 + $0x4] sm:$0xf]
        %v313 = vld [vmem:[%s4] sm:$0x1]
        %vm314 = vcmask 64512
        %v316 = vsel %vm314, %v310, 0
        %vm318 = vcmask 1043456
        %v320 = vsel %vm318, %v308, 0
        %322 = vmatprep.subr.bf16.mxu0 0
        %323 = vmatpush1.bf16.msra.mxu0 %v320
        %324 = vmatprep.subr.bf16.mxu0 0
        %325 = vmatpush1.bf16.msra.mxu0 0
        %326 = vmatprep.subr.bf16.mxu0 0
        %327 = vmatpush1.bf16.msra.mxu0 0
        %328 = vmatprep.subr.bf16.mxu0 0
        %329 = vmatpush1.bf16.msra.mxu0 0
        %330 = vmatprep.subr.bf16.mxu0 0
        %331 = vmatpush1.bf16.msra.mxu0 0
        %332 = vmatprep.subr.bf16.mxu0 0
        %333 = vmatpush1.bf16.msra.mxu0 0
        %334 = vmatprep.subr.bf16.mxu0 0
        %335 = vmatpush1.bf16.msra.mxu0 0
        %336 = vmatprep.subr.bf16.mxu0 0
        %337 = vmatpush1.bf16.msra.mxu0 0
        %338 = vmatprep.subr.bf16.mxu0 0
        %339 = vmatpush1.bf16.msra.mxu0 0
        %340 = vmatprep.subr.bf16.mxu0 0
        %341 = vmatpush1.bf16.msra.mxu0 0
        %342 = vmatprep.subr.bf16.mxu0 0
        %343 = vmatpush1.bf16.msra.mxu0 0
        %344 = vmatprep.subr.bf16.mxu0 0
        %345 = vmatpush1.bf16.msra.mxu0 0
        %346 = vmatprep.subr.bf16.mxu0 0
        %347 = vmatpush1.bf16.msra.mxu0 0
        %348 = vmatprep.subr.bf16.mxu0 0
        %349 = vmatpush1.bf16.msra.mxu0 0
        %350 = vmatprep.subr.bf16.mxu0 0
        %351 = vmatpush1.bf16.msra.mxu0 0
        %352 = vmatprep.subr.bf16.mxu0 0
        %353 = vmatpush1.bf16.msra.mxu0 0
        %354 = vmatprep.mubr.bf16.mxu0 0
        %355 = vmatmul.mubr.bf16.gmra.mrb[0].mxu0 %v316
        %v356 = vpop.f32.mrb[0].mxu0
        %v357 = vadd.f32 0.0, %v356
        %v358 = vpop.f32.mrb[0].mxu0
        %v359 = vpop.f32.mrb[0].mxu0
        %v360 = vpop.f32.mrb[0].mxu0
        %361 = vdwg.mxu0
        %v362 = vpack.c.bf16 %v357, %v357
        %v364 = vlaneseq
        %v365 = vshrl.u32 %v364, 7
        %v366 = vsub.s32 0, %v365
        %v367 = vrot.slane %v313, %v366
        %v371 = vunpack.c.l.b16 %v311
        %v372 = vunpack.c.l.b16 %v312
        %v373 = vpack.c.b16 %v372, %v371
        %vm375 = vcmask 130048
        %v377 = vsel %vm375, %v362, 0
        %379 = vmatprep.subr.bf16.mxu0 0
        %380 = vmatpush1.bf16.msra.mxu0 %v373
        %381 = vmatprep.subr.bf16.mxu0 0
        %382 = vmatpush1.bf16.msra.mxu0 0
        %383 = vmatprep.subr.bf16.mxu0 0
        %384 = vmatpush1.bf16.msra.mxu0 0
        %385 = vmatprep.subr.bf16.mxu0 0
        %386 = vmatpush1.bf16.msra.mxu0 0
        %387 = vmatprep.subr.bf16.mxu0 0
        %388 = vmatpush1.bf16.msra.mxu0 0
        %389 = vmatprep.subr.bf16.mxu0 0
        %390 = vmatpush1.bf16.msra.mxu0 0
        %391 = vmatprep.subr.bf16.mxu0 0
        %392 = vmatpush1.bf16.msra.mxu0 0
        %393 = vmatprep.subr.bf16.mxu0 0
        %394 = vmatpush1.bf16.msra.mxu0 0
        %395 = vmatprep.subr.bf16.mxu0 0
        %396 = vmatpush1.bf16.msra.mxu0 0
        %397 = vmatprep.subr.bf16.mxu0 0
        %398 = vmatpush1.bf16.msra.mxu0 0
        %399 = vmatprep.subr.bf16.mxu0 0
        %400 = vmatpush1.bf16.msra.mxu0 0
        %401 = vmatprep.subr.bf16.mxu0 0
        %402 = vmatpush1.bf16.msra.mxu0 0
        %403 = vmatprep.subr.bf16.mxu0 0
        %404 = vmatpush1.bf16.msra.mxu0 0
        %405 = vmatprep.subr.bf16.mxu0 0
        %406 = vmatpush1.bf16.msra.mxu0 0
        %407 = vmatprep.subr.bf16.mxu0 0
        %408 = vmatpush1.bf16.msra.mxu0 0
        %409 = vmatprep.subr.bf16.mxu0 0
        %410 = vmatpush1.bf16.msra.mxu0 0
        %411 = vmatprep.mubr.bf16.mxu0 0
        %412 = vmatmul.mubr.bf16.gmra.mrb[0].mxu0 %v377
        %v413 = vpop.f32.mrb[0].mxu0
        %v414 = vadd.f32 %v367, %v413
        %v415 = vpop.f32.mrb[0].mxu0
        %v416 = vpop.f32.mrb[0].mxu0
        %v417 = vpop.f32.mrb[0].mxu0
        %418 = vdwg.mxu0
        %v419 = vmax.f32 %v414, 0.0
        %v420 = vpack.c.bf16 %v419, %v419
        %v421 = vld [vmem:[#allocation8] sm:$0xf]
        %v422 = vld [vmem:[#allocation8 + $0x4] sm:$0xf]
        %v423 = vld [vmem:[#allocation8 + $0x8] sm:$0xf]
        %v424 = vld [vmem:[#allocation8 + $0xc] sm:$0xf]
        %v425 = vld [vmem:[#allocation8 + $0x10] sm:$0xf]
        %v426 = vld [vmem:[#allocation8 + $0x14] sm:$0xf]
        %v427 = vld [vmem:[#allocation8 + $0x18] sm:$0xf]
        %v428 = vld [vmem:[#allocation8 + $0x1c] sm:$0xf]
        %v429 = vld [vmem:[#allocation8 + $0x20] sm:$0xf]
        %v430 = vld [vmem:[#allocation8 + $0x24] sm:$0xf]
        %v431 = vld [vmem:[#allocation8 + $0x28] sm:$0xf]
        %v432 = vld [vmem:[#allocation8 + $0x2c] sm:$0xf]
        %v433 = vld [vmem:[#allocation8 + $0x30] sm:$0xf]
        %v434 = vld [vmem:[#allocation8 + $0x34] sm:$0xf]
        %v435 = vld [vmem:[#allocation8 + $0x38] sm:$0xf]
        %v436 = vld [vmem:[#allocation8 + $0x3c] sm:$0xf]
        %v453 = vunpack.c.l.b16 %v421
        %v454 = vunpack.c.l.b16 %v422
        %v455 = vunpack.c.l.b16 %v423
        %v456 = vunpack.c.l.b16 %v424
        %v457 = vunpack.c.l.b16 %v425
        %v458 = vunpack.c.l.b16 %v426
        %v459 = vunpack.c.l.b16 %v427
        %v460 = vunpack.c.l.b16 %v428
        %v461 = vunpack.c.l.b16 %v429
        %v462 = vunpack.c.l.b16 %v430
        %v463 = vunpack.c.l.b16 %v431
        %v464 = vunpack.c.l.b16 %v432
        %v465 = vunpack.c.l.b16 %v433
        %v466 = vunpack.c.l.b16 %v434
        %v467 = vunpack.c.l.b16 %v435
        %v468 = vunpack.c.l.b16 %v436
        %v469 = vpack.c.b16 %v454, %v453
        %v470 = vpack.c.b16 %v456, %v455
        %v471 = vpack.c.b16 %v458, %v457
        %v472 = vpack.c.b16 %v460, %v459
        %v473 = vpack.c.b16 %v462, %v461
        %v474 = vpack.c.b16 %v464, %v463
        %v475 = vpack.c.b16 %v466, %v465
        %v476 = vpack.c.b16 %v468, %v467
        %485 = vmatprep.subr.bf16.mxu0 0
        %486 = vmatpush1.bf16.msra.mxu0 %v469
        %487 = vmatprep.subr.bf16.mxu0 0
        %488 = vmatpush1.bf16.msra.mxu0 %v470
        %489 = vmatprep.subr.bf16.mxu0 0
        %490 = vmatpush1.bf16.msra.mxu0 %v471
        %491 = vmatprep.subr.bf16.mxu0 0
        %492 = vmatpush1.bf16.msra.mxu0 %v472
        %493 = vmatprep.subr.bf16.mxu0 0
        %494 = vmatpush1.bf16.msra.mxu0 %v473
        %495 = vmatprep.subr.bf16.mxu0 0
        %496 = vmatpush1.bf16.msra.mxu0 %v474
        %497 = vmatprep.subr.bf16.mxu0 0
        %498 = vmatpush1.bf16.msra.mxu0 %v475
        %499 = vmatprep.subr.bf16.mxu0 0
        %500 = vmatpush1.bf16.msra.mxu0 %v476
        %501 = vmatprep.subr.bf16.mxu0 0
        %502 = vmatpush1.bf16.msra.mxu0 0
        %503 = vmatprep.subr.bf16.mxu0 0
        %504 = vmatpush1.bf16.msra.mxu0 0
        %505 = vmatprep.subr.bf16.mxu0 0
        %506 = vmatpush1.bf16.msra.mxu0 0
        %507 = vmatprep.subr.bf16.mxu0 0
        %508 = vmatpush1.bf16.msra.mxu0 0
        %509 = vmatprep.subr.bf16.mxu0 0
        %510 = vmatpush1.bf16.msra.mxu0 0
        %511 = vmatprep.subr.bf16.mxu0 0
        %512 = vmatpush1.bf16.msra.mxu0 0
        %513 = vmatprep.subr.bf16.mxu0 0
        %514 = vmatpush1.bf16.msra.mxu0 0
        %515 = vmatprep.subr.bf16.mxu0 0
        %516 = vmatpush1.bf16.msra.mxu0 0
        %517 = vmatprep.mubr.bf16.mxu0 0
        %518 = vmatmul.mubr.bf16.gmra.mrb[0].mxu0 %v420
        %v519 = vpop.f32.mrb[0].mxu0
        %v520 = vadd.f32 0.0, %v519
        %v521 = vpop.f32.mrb[0].mxu0
        %v522 = vpop.f32.mrb[0].mxu0
        %v523 = vpop.f32.mrb[0].mxu0
        %524 = vdwg.mxu0
        %v525 = vpack.c.bf16 %v520, %v520
        %v527 = vsel %vm318, %v525, 0
        %529 = vmatprep.subr.bf16.mxu0 0
        %530 = vmatpush1.bf16.msra.mxu0 %v527
        %531 = vmatprep.subr.bf16.mxu0 0
        %532 = vmatpush1.bf16.msra.mxu0 0
        %533 = vmatprep.subr.bf16.mxu0 0
        %534 = vmatpush1.bf16.msra.mxu0 0
        %535 = vmatprep.subr.bf16.mxu0 0
        %536 = vmatpush1.bf16.msra.mxu0 0
        %537 = vmatprep.subr.bf16.mxu0 0
        %538 = vmatpush1.bf16.msra.mxu0 0
        %539 = vmatprep.subr.bf16.mxu0 0
        %540 = vmatpush1.bf16.msra.mxu0 0
        %541 = vmatprep.subr.bf16.mxu0 0
        %542 = vmatpush1.bf16.msra.mxu0 0
        %543 = vmatprep.subr.bf16.mxu0 0
        %544 = vmatpush1.bf16.msra.mxu0 0
        %545 = vmatprep.subr.bf16.mxu0 0
        %546 = vmatpush1.bf16.msra.mxu0 0
        %547 = vmatprep.subr.bf16.mxu0 0
        %548 = vmatpush1.bf16.msra.mxu0 0
        %549 = vmatprep.subr.bf16.mxu0 0
        %550 = vmatpush1.bf16.msra.mxu0 0
        %551 = vmatprep.subr.bf16.mxu0 0
        %552 = vmatpush1.bf16.msra.mxu0 0
        %553 = vmatprep.subr.bf16.mxu0 0
        %554 = vmatpush1.bf16.msra.mxu0 0
        %555 = vmatprep.subr.bf16.mxu0 0
        %556 = vmatpush1.bf16.msra.mxu0 0
        %557 = vmatprep.subr.bf16.mxu0 0
        %558 = vmatpush1.bf16.msra.mxu0 0
        %559 = vmatprep.subr.bf16.mxu0 0
        %560 = vmatpush1.bf16.msra.mxu0 0
        %561 = vmatprep.mubr.bf16.mxu0 0
        %562 = vmatmul.mubr.bf16.gmra.mrb[0].mxu0 %v316
        %v563 = vpop.f32.mrb[0].mxu0
        %v564 = vadd.f32 %v367, %v563
        %v565 = vpop.f32.mrb[0].mxu0
        %v566 = vpop.f32.mrb[0].mxu0
        %v567 = vpop.f32.mrb[0].mxu0
        %568 = vdwg.mxu0
        %569 = vst [vmem:[%s305] sm:$0xff] %v564
        %s570 = sand.u32 %s149, 1
        %s571 = scalar_lea.sflag [#allocation4], %s570
        %s572 = sand.u32 %s149, 1
        %s573 = smul.addr %s572, 8
        %s574 = scalar_lea.vmem [#allocation10], %s573
        // Predicated region
        $region57: #{tpu_custom_call.1} parent=39 // pred_check
          %p575 = pneg %p159
        $region58: #{tpu_custom_call.1} parent=39 // pred_check_branch
          %577 = sbr.rel (%p575) target = $region60
        $region59: #{tpu_custom_call.1} parent=39 // pred_region
          %s579 = ssub.s32 128, 128
          %580 = vsyncadd %s571, %s579
          %s581 = smul.addr %s26, 128
          %s582 = scalar_lea.hbm %s5, %s581
          %s584 = sshll.u32 %s574, 4
          %s585 = int_to_ptr.vmem [resolvable:$true] %s584
          %587 = dma.vmem_to_hbm [thread:$0]  %s585, 128, %s582, %s571
        $region60: #{tpu_custom_call.1} parent=39 // pred_fallthru
          _
      $region40: #{tpu_custom_call.1} parent=5 // pred_fallthru
        _
      %p588 = scmp.le.s32.totalorder 2, %s21
      // Predicated region
      $region61: #{tpu_custom_call.1} parent=5 // pred_check
        %p589 = pneg %p588
      $region62: #{tpu_custom_call.1} parent=5 // pred_check_branch
        %591 = sbr.rel (%p589) target = $region64
      $region63: #{tpu_custom_call.1} parent=5 // pred_region
        %s592 = ssub.s32 %s21, 2
        // Predicated region
        $region65: #{tpu_custom_call.1} parent=63 // pred_check
          %p593 = pneg %p165
        $region66: #{tpu_custom_call.1} parent=63 // pred_check_branch
          %595 = sbr.rel (%p593) target = $region68
        $region67: #{tpu_custom_call.1} parent=63 // pred_region
          %s596 = sand.u32 %s150, 1
          %s597 = scalar_lea.sflag [#allocation4], %s596
          %s598 = sand.u32 %s150, 1
          %s599 = smul.addr %s598, 8
          %s600 = scalar_lea.vmem [#allocation10], %s599
          %601 = dma.done %s597, 128
        $region68: #{tpu_custom_call.1} parent=63 // pred_fallthru
          _
      $region64: #{tpu_custom_call.1} parent=5 // pred_fallthru
        _
    $region6: #{tpu_custom_call.1} parent=1 // loop_footer
      %s25 = sadd.s32 1, %s21
    $region7: #{tpu_custom_call.1} parent=1 // loop_footer_branch
      %20 = sbr.rel target = $region3
    $region8: #{tpu_custom_call.1} parent=1 // loop_exit
      _
    %602 = vsyncpa [#allocation3], 1
    %s603 = scalar_lea.sflag [#allocation3], 1
    %604 = vsyncpa %s603, 1
    %605 = vsyncpa [#allocation6], 1
    %s606 = scalar_lea.sflag [#allocation6], 1
    %607 = vsyncpa %s606, 1
    %608 = vsyncpa [#allocation9], 1
    %609 = vsyncpa [#allocation4], 1
    %s610 = scalar_lea.sflag [#allocation4], 1
    %611 = vsyncpa %s610, 1

// kernel: tpu_custom_call.1
$region0: #{tpu_custom_call.1}
  #allocation0 [shape = 'u32[]', space=smem, size = 0x4, offset = 0x4, fixed_abs, tag = 'smem constant byte address 0x4 - core index']
  #allocation1 [shape = 'u32[144,128]{1,0:T(1,128)}', space=vmem, size = 0x12000, scoped, tag = 'internal scratch']
  %s0 = inlined_call_operand.hbm [shape: f32[16,16], index: 0, kind: input, shape index: {}]
  %s1 = inlined_call_operand.hbm [shape: f32[2,8,8], index: 1, kind: input, shape index: {}]
  %s2 = inlined_call_operand.hbm [shape: bf16[16,128], index: 2, kind: input, shape index: {}]
  %s3 = inlined_call_operand.hbm [shape: bf16[128,128], index: 3, kind: input, shape index: {}]
  %s4 = inlined_call_operand.vmem [shape: f32[1,128], index: 4, kind: input, shape index: {}]
  %s5 = inlined_call_operand.hbm [shape: f32[16,128], index: 5, kind: output, shape index: {}]
  %s6 = sld [smem:[#allocation0]]
  $region69: #{tpu_custom_call.1} parent=0
    _
  %s8 = ssub.s32 1, %s6
  %s9 = scalar_select 0, %s8, %s6
  $region1: #{tpu_custom_call.1} parent=0
    #allocation2 [shape = 'u8[8192]{0}', space=vmem, size = 0x2000, scoped, tag = 'input window, operand 0']
    #allocation3 [shape = 's32[2]{0}', space=sflag, size = 0x8, scoped, tag = 'scoped memory for tpu_custom_call.1']
    #allocation4 [shape = 's32[2]{0}', space=sflag, size = 0x8, scoped, tag = 'scoped memory for tpu_custom_call.1']
    #allocation5 [shape = 'u8[8192]{0}', space=vmem, size = 0x2000, scoped, tag = 'input window, operand 1']
    #allocation6 [shape = 's32[2]{0}', space=sflag, size = 0x8, scoped, tag = 'scoped memory for tpu_custom_call.1']
    #allocation7 [shape = 'u8[4096]{0}', space=vmem, size = 0x1000, scoped, tag = 'input window, operand 2, single buffered']
    #allocation8 [shape = 'u8[32768]{0}', space=vmem, size = 0x8000, scoped, tag = 'input window, operand 3, single buffered']
    #allocation9 [shape = 's32[1]{0}', space=sflag, size = 0x4, scoped, tag = 'scoped memory for tpu_custom_call.1']
    #allocation10 [shape = 'u8[8192]{0}', space=vmem, size = 0x2000, scoped, tag = 'output window, operand 0']
    %10 = vsyncpa [#allocation3], 0
    %s11 = scalar_lea.sflag [#allocation3], 1
    %12 = vsyncpa %s11, 0
    %13 = vsyncpa [#allocation6], 0
    %s14 = scalar_lea.sflag [#allocation6], 1
    %15 = vsyncpa %s14, 0
    %16 = vsyncpa [#allocation9], 0
    %17 = vsyncpa [#allocation4], 0
    %s18 = scalar_lea.sflag [#allocation4], 1
    %19 = vsyncpa %s18, 0
    loop: start=0, step=1, limit=4
    $region2: #{tpu_custom_call.1} parent=1 // loop_pre_header
      _
    $region3: #{tpu_custom_call.1} parent=1 // loop_header
      %s21 = sphi 0, %s25
      %p22 = scmp.ge.s32.totalorder %s21, 4
      %s31 = sphi 0, %s33
      %s34 = sphi 0, %s31
      %s35 = sphi 0, %s34
      %s51 = sphi 0, %s35
      %s57 = sphi 0, %s59
      %s60 = sphi 0, %s57
      %s61 = sphi 0, %s60
      %s77 = sphi 0, %s61
      %s81 = sphi 0, %s81
      %s83 = sphi 0, %s81
      %s84 = sphi 0, %s83
      %s98 = sphi 0, %s84
      %s102 = sphi 0, %s102
      %s104 = sphi 0, %s102
      %s105 = sphi 0, %s104
      %s119 = sphi 0, %s105
      %s123 = sphi 0, %s123
      %s125 = sphi 0, %s123
      %s126 = sphi 0, %s125
      %s140 = sphi 0, %s126
      %s146 = sphi 0, %s148
      %s149 = sphi 0, %s146
      %s150 = sphi 0, %s149
      %s166 = sphi 0, %s150
    $region4: #{tpu_custom_call.1} parent=1 // loop_header_branch
      %24 = sbr.rel (%p22) target = $region8
    $region5: #{tpu_custom_call.1} parent=1 // loop_body
      %s26 = ssub.s32 %s21, 1
      %s27 = ssub.s32 %s21, 2
      %s28 = sadd.s32 %s21, 1
      %s29 = ssub.s32 %s21, %s28
      %p30 = scmp.eq.s32.totalorder %s29, 0
      %s32 = sadd.s32 %s31, 1
      %s33 = scalar_select %p30, %s31, %s32
      %p36 = pneg %p30
      %p37 = scmp.eq.s32.totalorder %s21, 1
      %p38 = por %p36, %p37
      %p39 = scmp.ne.s32.totalorder %s31, %s34
      %p40 = scmp.eq.s32.totalorder %s21, 0
      %p41 = por %p39, %p40
      %p42 = scmp.ne.s32.totalorder %s31, %s34
      %p43 = scmp.eq.s32.totalorder %s26, 1
      %p44 = por %p42, %p43
      %p45 = scmp.ne.s32.totalorder %s34, %s35
      %p46 = scmp.eq.s32.totalorder %s26, 0
      %p47 = por %p45, %p46
      %p48 = scmp.ne.s32.totalorder %s34, %s35
      %p49 = scmp.eq.s32.totalorder %s27, 1
      %p50 = por %p48, %p49
      %p52 = scmp.ne.s32.totalorder %s35, %s51
      %p53 = scmp.eq.s32.totalorder %s27, 0
      %p54 = por %p52, %p53
      %s55 = ssub.s32 %s21, %s28
      %p56 = scmp.eq.s32.totalorder %s55, 0
      %s58 = sadd.s32 %s57, 1
      %s59 = scalar_select %p56, %s57, %s58
      %p62 = pneg %p56
      %p63 = scmp.eq.s32.totalorder %s21, 1
      %p64 = por %p62, %p63
      %p65 = scmp.ne.s32.totalorder %s57, %s60
      %p66 = scmp.eq.s32.totalorder %s21, 0
      %p67 = por %p65, %p66
      %p68 = scmp.ne.s32.totalorder %s57, %s60
      %p69 = scmp.eq.s32.totalorder %s26, 1
      %p70 = por %p68, %p69
      %p71 = scmp.ne.s32.totalorder %s60, %s61
      %p72 = scmp.eq.s32.totalorder %s26, 0
      %p73 = por %p71, %p72
      %p74 = scmp.ne.s32.totalorder %s60, %s61
      %p75 = scmp.eq.s32.totalorder %s27, 1
      %p76 = por %p74, %p75
      %p78 = scmp.ne.s32.totalorder %s61, %s77
      %p79 = scmp.eq.s32.totalorder %s27, 0
      %p80 = por %p78, %p79
      %s82 = sadd.s32 %s81, 1
      %p85 = scmp.eq.s32.totalorder %s21, 1
      %p86 = scmp.ne.s32.totalorder %s81, %s83
      %p87 = scmp.eq.s32.totalorder %s21, 0
      %p88 = por %p86, %p87
      %p89 = scmp.ne.s32.totalorder %s81, %s83
      %p90 = scmp.eq.s32.totalorder %s26, 1
      %p91 = por %p89, %p90
      %p92 = scmp.ne.s32.totalorder %s83, %s84
      %p93 = scmp.eq.s32.totalorder %s26, 0
      %p94 = por %p92, %p93
      %p95 = scmp.ne.s32.totalorder %s83, %s84
      %p96 = scmp.eq.s32.totalorder %s27, 1
      %p97 = por %p95, %p96
      %p99 = scmp.ne.s32.totalorder %s84, %s98
      %p100 = scmp.eq.s32.totalorder %s27, 0
      %p101 = por %p99, %p100
      %s103 = sadd.s32 %s102, 1
      %p106 = scmp.eq.s32.totalorder %s21, 1
      %p107 = scmp.ne.s32.totalorder %s102, %s104
      %p108 = scmp.eq.s32.totalorder %s21, 0
      %p109 = por %p107, %p108
      %p110 = scmp.ne.s32.totalorder %s102, %s104
      %p111 = scmp.eq.s32.totalorder %s26, 1
      %p112 = por %p110, %p111
      %p113 = scmp.ne.s32.totalorder %s104, %s105
      %p114 = scmp.eq.s32.totalorder %s26, 0
      %p115 = por %p113, %p114
      %p116 = scmp.ne.s32.totalorder %s104, %s105
      %p117 = scmp.eq.s32.totalorder %s27, 1
      %p118 = por %p116, %p117
      %p120 = scmp.ne.s32.totalorder %s105, %s119
      %p121 = scmp.eq.s32.totalorder %s27, 0
      %p122 = por %p120, %p121
      %s124 = sadd.s32 %s123, 1
      %p127 = scmp.eq.s32.totalorder %s21, 1
      %p128 = scmp.ne.s32.totalorder %s123, %s125
      %p129 = scmp.eq.s32.totalorder %s21, 0
      %p130 = por %p128, %p129
      %p131 = scmp.ne.s32.totalorder %s123, %s125
      %p132 = scmp.eq.s32.totalorder %s26, 1
      %p133 = por %p131, %p132
      %p134 = scmp.ne.s32.totalorder %s125, %s126
      %p135 = scmp.eq.s32.totalorder %s26, 0
      %p136 = por %p134, %p135
      %p137 = scmp.ne.s32.totalorder %s125, %s126
      %p138 = scmp.eq.s32.totalorder %s27, 1
      %p139 = por %p137, %p138
      %p141 = scmp.ne.s32.totalorder %s126, %s140
      %p142 = scmp.eq.s32.totalorder %s27, 0
      %p143 = por %p141, %p142
      %s144 = ssub.s32 %s21, %s28
      %p145 = scmp.eq.s32.totalorder %s144, 0
      %s147 = sadd.s32 %s146, 1
      %s148 = scalar_select %p145, %s146, %s147
      %p151 = pneg %p145
      %p152 = scmp.eq.s32.totalorder %s21, 1
      %p153 = por %p151, %p152
      %p154 = scmp.ne.s32.totalorder %s146, %s149
      %p155 = scmp.eq.s32.totalorder %s21, 0
      %p156 = por %p154, %p155
      %p157 = scmp.ne.s32.totalorder %s146, %s149
      %p158 = scmp.eq.s32.totalorder %s26, 1
      %p159 = por %p157, %p158
      %p160 = scmp.ne.s32.totalorder %s149, %s150
      %p161 = scmp.eq.s32.totalorder %s26, 0
      %p162 = por %p160, %p161
      %p163 = scmp.ne.s32.totalorder %s149, %s150
      %p164 = scmp.eq.s32.totalorder %s27, 1
      %p165 = por %p163, %p164
      %p167 = scmp.ne.s32.totalorder %s150, %s166
      %p168 = scmp.eq.s32.totalorder %s27, 0
      %p169 = por %p167, %p168
      %p170 = scmp.le.s32.totalorder 1, %s21
      %p171 = scmp.lt.s32.totalorder %s21, 3
      %p172 = pnand %p170, %p171
      %p173 = pneg %p172
      // Predicated region
      $region9: #{tpu_custom_call.1} parent=5 // pred_check
        _
      $region10: #{tpu_custom_call.1} parent=5 // pred_check_branch
        %175 = sbr.rel (%p172) target = $region12
      $region11: #{tpu_custom_call.1} parent=5 // pred_region
        %s176 = ssub.s32 %s21, 1
        // Predicated region
        $region13: #{tpu_custom_call.1} parent=11 // pred_check
          %p177 = pneg %p94
        $region14: #{tpu_custom_call.1} parent=11 // pred_check_branch
          %179 = sbr.rel (%p177) target = $region16
        $region15: #{tpu_custom_call.1} parent=11 // pred_region
          %s181 = ssub.s32 128, 128
          %182 = vsyncadd [#allocation6], %s181
          %s183 = sshll.u32 [#allocation7], 4
          %s184 = int_to_ptr.vmem [resolvable:$true] %s183
          %189 = dma.hbm_to_vmem [thread:$0]  %s2, 128, %s184, [#allocation6], 64, 64, 4
        $region16: #{tpu_custom_call.1} parent=11 // pred_fallthru
          _
        // Predicated region
        $region17: #{tpu_custom_call.1} parent=11 // pred_check
          %p190 = pneg %p115
        $region18: #{tpu_custom_call.1} parent=11 // pred_check_branch
          %192 = sbr.rel (%p190) target = $region20
        $region19: #{tpu_custom_call.1} parent=11 // pred_region
          %s194 = ssub.s32 1024, 1024
          %195 = vsyncadd [#allocation9], %s194
          %s196 = sshll.u32 [#allocation8], 4
          %s197 = int_to_ptr.vmem [resolvable:$true] %s196
          %202 = dma.hbm_to_vmem [thread:$0]  %s3, 1024, %s197, [#allocation9], 64, 64, 4
        $region20: #{tpu_custom_call.1} parent=11 // pred_fallthru
          _
        // Predicated region
        $region21: #{tpu_custom_call.1} parent=11 // pred_check
          %p203 = pneg %p136
        $region22: #{tpu_custom_call.1} parent=11 // pred_check_branch
          %205 = sbr.rel (%p203) target = $region24
        $region23: #{tpu_custom_call.1} parent=11 // pred_region
          _
        $region24: #{tpu_custom_call.1} parent=11 // pred_fallthru
          _
      $region12: #{tpu_custom_call.1} parent=5 // pred_fallthru
        _
      %p206 = scmp.lt.s32.totalorder %s21, 2
      // Predicated region
      $region25: #{tpu_custom_call.1} parent=5 // pred_check
        %p207 = pneg %p206
      $region26: #{tpu_custom_call.1} parent=5 // pred_check_branch
        %209 = sbr.rel (%p207) target = $region28
      $region27: #{tpu_custom_call.1} parent=5 // pred_region
        // Predicated region
        $region29: #{tpu_custom_call.1} parent=27 // pred_check
          %p210 = pneg %p41
        $region30: #{tpu_custom_call.1} parent=27 // pred_check_branch
          %212 = sbr.rel (%p210) target = $region32
        $region31: #{tpu_custom_call.1} parent=27 // pred_region
          %s213 = sand.u32 %s31, 1
          %s214 = scalar_lea.sflag [#allocation3], %s213
          %s215 = sand.u32 %s31, 1
          %s216 = smul.addr %s215, 8
          %s217 = scalar_lea.vmem [#allocation2], %s216
          %s219 = ssub.s32 128, 128
          %220 = vsyncadd %s214, %s219
          %s221 = smul.addr %s21, 128
          %s222 = scalar_lea.hbm %s0, %s221
          %s224 = sshll.u32 %s217, 4
          %s225 = int_to_ptr.vmem [resolvable:$true] %s224
          %227 = dma.hbm_to_vmem [thread:$0]  %s222, 128, %s225, %s214
        $region32: #{tpu_custom_call.1} parent=27 // pred_fallthru
          _
        // Predicated region
        $region33: #{tpu_custom_call.1} parent=27 // pred_check
          %p228 = pneg %p67
        $region34: #{tpu_custom_call.1} parent=27 // pred_check_branch
          %230 = sbr.rel (%p228) target = $region36
        $region35: #{tpu_custom_call.1} parent=27 // pred_region
          %s231 = sand.u32 %s21, 1
          %s232 = scalar_lea.sflag [#allocation6], %s231
          %s233 = sand.u32 %s57, 1
          %s234 = smul.addr %s233, 8
          %s235 = scalar_lea.vmem [#allocation5], %s234
          %s237 = ssub.s32 128, 128
          %238 = vsyncadd %s232, %s237
          %s239 = smul.addr %s21, 128
          %s240 = scalar_lea.hbm %s1, %s239
          %s242 = sshll.u32 %s235, 4
          %s243 = int_to_ptr.vmem [resolvable:$true] %s242
          %245 = dma.hbm_to_vmem [thread:$0]  %s240, 128, %s243, %s232
        $region36: #{tpu_custom_call.1} parent=27 // pred_fallthru
          _
      $region28: #{tpu_custom_call.1} parent=5 // pred_fallthru
        _
      %p246 = scmp.le.s32.totalorder 1, %s21
      %p247 = scmp.lt.s32.totalorder %s21, 3
      %p248 = pnand %p246, %p247
      %p249 = pneg %p248
      // Predicated region
      $region37: #{tpu_custom_call.1} parent=5 // pred_check
        _
      $region38: #{tpu_custom_call.1} parent=5 // pred_check_branch
        %251 = sbr.rel (%p248) target = $region40
      $region39: #{tpu_custom_call.1} parent=5 // pred_region
        %s252 = ssub.s32 %s21, 1
        %s253 = sand.u32 %s34, 1
        %s254 = scalar_lea.sflag [#allocation3], %s253
        %s255 = sand.u32 %s34, 1
        %s256 = smul.addr %s255, 8
        %s257 = scalar_lea.vmem [#allocation2], %s256
        // Predicated region
        $region41: #{tpu_custom_call.1} parent=39 // pred_check
          %p258 = pneg %p47
        $region42: #{tpu_custom_call.1} parent=39 // pred_check_branch
          %260 = sbr.rel (%p258) target = $region44
        $region43: #{tpu_custom_call.1} parent=39 // pred_region
          %261 = dma.done %s254, 128
        $region44: #{tpu_custom_call.1} parent=39 // pred_fallthru
          _
        %s262 = sand.u32 %s26, 1
        %s263 = scalar_lea.sflag [#allocation6], %s262
        %s264 = sand.u32 %s60, 1
        %s265 = smul.addr %s264, 8
        %s266 = scalar_lea.vmem [#allocation5], %s265
        // Predicated region
        $region45: #{tpu_custom_call.1} parent=39 // pred_check
          %p267 = pneg %p73
        $region46: #{tpu_custom_call.1} parent=39 // pred_check_branch
          %269 = sbr.rel (%p267) target = $region48
        $region47: #{tpu_custom_call.1} parent=39 // pred_region
          %270 = dma.done %s263, 128
        $region48: #{tpu_custom_call.1} parent=39 // pred_fallthru
          _
        // Predicated region
        $region49: #{tpu_custom_call.1} parent=39 // pred_check
          %p271 = pneg %p94
        $region50: #{tpu_custom_call.1} parent=39 // pred_check_branch
          %273 = sbr.rel (%p271) target = $region52
        $region51: #{tpu_custom_call.1} parent=39 // pred_region
          %274 = dma.done [#allocation6], 128
        $region52: #{tpu_custom_call.1} parent=39 // pred_fallthru
          _
        // Predicated region
        $region53: #{tpu_custom_call.1} parent=39 // pred_check
          %p275 = pneg %p115
        $region54: #{tpu_custom_call.1} parent=39 // pred_check_branch
          %277 = sbr.rel (%p275) target = $region56
        $region55: #{tpu_custom_call.1} parent=39 // pred_region
          %278 = dma.done [#allocation9], 1024
        $region56: #{tpu_custom_call.1} parent=39 // pred_fallthru
          _
        %s279 = sand.u32 %s34, 1
        %s280 = scalar_lea.sflag [#allocation3], %s279
        %s281 = sand.u32 %s34, 1
        %s282 = smul.addr %s281, 8
        %s283 = scalar_lea.vmem [#allocation2], %s282
        %p284 = pneg %p47
        %p285 = pneg %p44
        %s286 = sand.u32 %s26, 1
        %s287 = scalar_lea.sflag [#allocation6], %s286
        %s288 = sand.u32 %s60, 1
        %s289 = smul.addr %s288, 8
        %s290 = scalar_lea.vmem [#allocation5], %s289
        %p291 = pneg %p73
        %p292 = pneg %p70
        %p293 = pneg %p94
        %p294 = pneg %p91
        %p295 = pneg %p115
        %p296 = pneg %p112
        %p297 = pneg %p136
        %p298 = pneg %p133
        %p299 = pneg %p162
        %p300 = pneg %p159
        %s301 = sand.u32 %s149, 1
        %s302 = scalar_lea.sflag [#allocation4], %s301
        %s303 = sand.u32 %s149, 1
        %s304 = smul.addr %s303, 8
        %s305 = scalar_lea.vmem [#allocation10], %s304
        %v307 = vld [vmem:[%s257] sm:$0xff]
        %v308 = vpack.c.bf16 %v307, %v307
        %v309 = vld [vmem:[%s266] sm:$0xff]
        %v310 = vpack.c.bf16 %v309, %v309
        %v311 = vld [vmem:[#allocation7] sm:$0xf]
        %v312 = vld [vmem:[#allocation7 + $0x4] sm:$0xf]
        %v313 = vld [vmem:[%s4] sm:$0x1]
        %vm314 = vcmask 64512
        %v316 = vsel %vm314, %v310, 0
        %vm318 = vcmask 1043456
        %v320 = vsel %vm318, %v308, 0
        %322 = vmatprep.subr.bf16.mxu0 0
        %323 = vmatpush1.bf16.msra.mxu0 %v320
        %324 = vmatprep.subr.bf16.mxu0 0
        %325 = vmatpush1.bf16.msra.mxu0 0
        %326 = vmatprep.subr.bf16.mxu0 0
        %327 = vmatpush1.bf16.msra.mxu0 0
        %328 = vmatprep.subr.bf16.mxu0 0
        %329 = vmatpush1.bf16.msra.mxu0 0
        %330 = vmatprep.subr.bf16.mxu0 0
        %331 = vmatpush1.bf16.msra.mxu0 0
        %332 = vmatprep.subr.bf16.mxu0 0
        %333 = vmatpush1.bf16.msra.mxu0 0
        %334 = vmatprep.subr.bf16.mxu0 0
        %335 = vmatpush1.bf16.msra.mxu0 0
        %336 = vmatprep.subr.bf16.mxu0 0
        %337 = vmatpush1.bf16.msra.mxu0 0
        %338 = vmatprep.subr.bf16.mxu0 0
        %339 = vmatpush1.bf16.msra.mxu0 0
        %340 = vmatprep.subr.bf16.mxu0 0
        %341 = vmatpush1.bf16.msra.mxu0 0
        %342 = vmatprep.subr.bf16.mxu0 0
        %343 = vmatpush1.bf16.msra.mxu0 0
        %344 = vmatprep.subr.bf16.mxu0 0
        %345 = vmatpush1.bf16.msra.mxu0 0
        %346 = vmatprep.subr.bf16.mxu0 0
        %347 = vmatpush1.bf16.msra.mxu0 0
        %348 = vmatprep.subr.bf16.mxu0 0
        %349 = vmatpush1.bf16.msra.mxu0 0
        %350 = vmatprep.subr.bf16.mxu0 0
        %351 = vmatpush1.bf16.msra.mxu0 0
        %352 = vmatprep.subr.bf16.mxu0 0
        %353 = vmatpush1.bf16.msra.mxu0 0
        %354 = vmatprep.mubr.bf16.mxu0 0
        %355 = vmatmul.mubr.bf16.gmra.mrb[0].mxu0 %v316
        %v356 = vpop.f32.mrb[0].mxu0
        %v357 = vadd.f32 0.0, %v356
        %v358 = vpop.f32.mrb[0].mxu0
        %v359 = vpop.f32.mrb[0].mxu0
        %v360 = vpop.f32.mrb[0].mxu0
        %361 = vdwg.mxu0
        %v362 = vpack.c.bf16 %v357, %v357
        %v364 = vlaneseq
        %v365 = vshrl.u32 %v364, 7
        %v366 = vsub.s32 0, %v365
        %v367 = vrot.slane %v313, %v366
        %v371 = vunpack.c.l.b16 %v311
        %v372 = vunpack.c.l.b16 %v312
        %v373 = vpack.c.b16 %v372, %v371
        %vm375 = vcmask 130048
        %v377 = vsel %vm375, %v362, 0
        %379 = vmatprep.subr.bf16.mxu0 0
        %380 = vmatpush1.bf16.msra.mxu0 %v373
        %381 = vmatprep.subr.bf16.mxu0 0
        %382 = vmatpush1.bf16.msra.mxu0 0
        %383 = vmatprep.subr.bf16.mxu0 0
        %384 = vmatpush1.bf16.msra.mxu0 0
        %385 = vmatprep.subr.bf16.mxu0 0
        %386 = vmatpush1.bf16.msra.mxu0 0
        %387 = vmatprep.subr.bf16.mxu0 0
        %388 = vmatpush1.bf16.msra.mxu0 0
        %389 = vmatprep.subr.bf16.mxu0 0
        %390 = vmatpush1.bf16.msra.mxu0 0
        %391 = vmatprep.subr.bf16.mxu0 0
        %392 = vmatpush1.bf16.msra.mxu0 0
        %393 = vmatprep.subr.bf16.mxu0 0
        %394 = vmatpush1.bf16.msra.mxu0 0
        %395 = vmatprep.subr.bf16.mxu0 0
        %396 = vmatpush1.bf16.msra.mxu0 0
        %397 = vmatprep.subr.bf16.mxu0 0
        %398 = vmatpush1.bf16.msra.mxu0 0
        %399 = vmatprep.subr.bf16.mxu0 0
        %400 = vmatpush1.bf16.msra.mxu0 0
        %401 = vmatprep.subr.bf16.mxu0 0
        %402 = vmatpush1.bf16.msra.mxu0 0
        %403 = vmatprep.subr.bf16.mxu0 0
        %404 = vmatpush1.bf16.msra.mxu0 0
        %405 = vmatprep.subr.bf16.mxu0 0
        %406 = vmatpush1.bf16.msra.mxu0 0
        %407 = vmatprep.subr.bf16.mxu0 0
        %408 = vmatpush1.bf16.msra.mxu0 0
        %409 = vmatprep.subr.bf16.mxu0 0
        %410 = vmatpush1.bf16.msra.mxu0 0
        %411 = vmatprep.mubr.bf16.mxu0 0
        %412 = vmatmul.mubr.bf16.gmra.mrb[0].mxu0 %v377
        %v413 = vpop.f32.mrb[0].mxu0
        %v414 = vadd.f32 %v367, %v413
        %v415 = vpop.f32.mrb[0].mxu0
        %v416 = vpop.f32.mrb[0].mxu0
        %v417 = vpop.f32.mrb[0].mxu0
        %418 = vdwg.mxu0
        %v419 = vmax.f32 %v414, 0.0
        %v420 = vpack.c.bf16 %v419, %v419
        %v421 = vld [vmem:[#allocation8] sm:$0xf]
        %v422 = vld [vmem:[#allocation8 + $0x4] sm:$0xf]
        %v423 = vld [vmem:[#allocation8 + $0x8] sm:$0xf]
        %v424 = vld [vmem:[#allocation8 + $0xc] sm:$0xf]
        %v425 = vld [vmem:[#allocation8 + $0x10] sm:$0xf]
        %v426 = vld [vmem:[#allocation8 + $0x14] sm:$0xf]
        %v427 = vld [vmem:[#allocation8 + $0x18] sm:$0xf]
        %v428 = vld [vmem:[#allocation8 + $0x1c] sm:$0xf]
        %v429 = vld [vmem:[#allocation8 + $0x20] sm:$0xf]
        %v430 = vld [vmem:[#allocation8 + $0x24] sm:$0xf]
        %v431 = vld [vmem:[#allocation8 + $0x28] sm:$0xf]
        %v432 = vld [vmem:[#allocation8 + $0x2c] sm:$0xf]
        %v433 = vld [vmem:[#allocation8 + $0x30] sm:$0xf]
        %v434 = vld [vmem:[#allocation8 + $0x34] sm:$0xf]
        %v435 = vld [vmem:[#allocation8 + $0x38] sm:$0xf]
        %v436 = vld [vmem:[#allocation8 + $0x3c] sm:$0xf]
        %v453 = vunpack.c.l.b16 %v421
        %v454 = vunpack.c.l.b16 %v422
        %v455 = vunpack.c.l.b16 %v423
        %v456 = vunpack.c.l.b16 %v424
        %v457 = vunpack.c.l.b16 %v425
        %v458 = vunpack.c.l.b16 %v426
        %v459 = vunpack.c.l.b16 %v427
        %v460 = vunpack.c.l.b16 %v428
        %v461 = vunpack.c.l.b16 %v429
        %v462 = vunpack.c.l.b16 %v430
        %v463 = vunpack.c.l.b16 %v431
        %v464 = vunpack.c.l.b16 %v432
        %v465 = vunpack.c.l.b16 %v433
        %v466 = vunpack.c.l.b16 %v434
        %v467 = vunpack.c.l.b16 %v435
        %v468 = vunpack.c.l.b16 %v436
        %v469 = vpack.c.b16 %v454, %v453
        %v470 = vpack.c.b16 %v456, %v455
        %v471 = vpack.c.b16 %v458, %v457
        %v472 = vpack.c.b16 %v460, %v459
        %v473 = vpack.c.b16 %v462, %v461
        %v474 = vpack.c.b16 %v464, %v463
        %v475 = vpack.c.b16 %v466, %v465
        %v476 = vpack.c.b16 %v468, %v467
        %485 = vmatprep.subr.bf16.mxu0 0
        %486 = vmatpush1.bf16.msra.mxu0 %v469
        %487 = vmatprep.subr.bf16.mxu0 0
        %488 = vmatpush1.bf16.msra.mxu0 %v470
        %489 = vmatprep.subr.bf16.mxu0 0
        %490 = vmatpush1.bf16.msra.mxu0 %v471
        %491 = vmatprep.subr.bf16.mxu0 0
        %492 = vmatpush1.bf16.msra.mxu0 %v472
        %493 = vmatprep.subr.bf16.mxu0 0
        %494 = vmatpush1.bf16.msra.mxu0 %v473
        %495 = vmatprep.subr.bf16.mxu0 0
        %496 = vmatpush1.bf16.msra.mxu0 %v474
        %497 = vmatprep.subr.bf16.mxu0 0
        %498 = vmatpush1.bf16.msra.mxu0 %v475
        %499 = vmatprep.subr.bf16.mxu0 0
        %500 = vmatpush1.bf16.msra.mxu0 %v476
        %501 = vmatprep.subr.bf16.mxu0 0
        %502 = vmatpush1.bf16.msra.mxu0 0
        %503 = vmatprep.subr.bf16.mxu0 0
        %504 = vmatpush1.bf16.msra.mxu0 0
        %505 = vmatprep.subr.bf16.mxu0 0
        %506 = vmatpush1.bf16.msra.mxu0 0
        %507 = vmatprep.subr.bf16.mxu0 0
        %508 = vmatpush1.bf16.msra.mxu0 0
        %509 = vmatprep.subr.bf16.mxu0 0
        %510 = vmatpush1.bf16.msra.mxu0 0
        %511 = vmatprep.subr.bf16.mxu0 0
        %512 = vmatpush1.bf16.msra.mxu0 0
        %513 = vmatprep.subr.bf16.mxu0 0
        %514 = vmatpush1.bf16.msra.mxu0 0
        %515 = vmatprep.subr.bf16.mxu0 0
        %516 = vmatpush1.bf16.msra.mxu0 0
        %517 = vmatprep.mubr.bf16.mxu0 0
        %518 = vmatmul.mubr.bf16.gmra.mrb[0].mxu0 %v420
        %v519 = vpop.f32.mrb[0].mxu0
        %v520 = vadd.f32 0.0, %v519
        %v521 = vpop.f32.mrb[0].mxu0
        %v522 = vpop.f32.mrb[0].mxu0
        %v523 = vpop.f32.mrb[0].mxu0
        %524 = vdwg.mxu0
        %v525 = vpack.c.bf16 %v520, %v520
        %v527 = vsel %vm318, %v525, 0
        %529 = vmatprep.subr.bf16.mxu0 0
        %530 = vmatpush1.bf16.msra.mxu0 %v527
        %531 = vmatprep.subr.bf16.mxu0 0
        %532 = vmatpush1.bf16.msra.mxu0 0
        %533 = vmatprep.subr.bf16.mxu0 0
        %534 = vmatpush1.bf16.msra.mxu0 0
        %535 = vmatprep.subr.bf16.mxu0 0
        %536 = vmatpush1.bf16.msra.mxu0 0
        %537 = vmatprep.subr.bf16.mxu0 0
        %538 = vmatpush1.bf16.msra.mxu0 0
        %539 = vmatprep.subr.bf16.mxu0 0
        %540 = vmatpush1.bf16.msra.mxu0 0
        %541 = vmatprep.subr.bf16.mxu0 0
        %542 = vmatpush1.bf16.msra.mxu0 0
        %543 = vmatprep.subr.bf16.mxu0 0
        %544 = vmatpush1.bf16.msra.mxu0 0
        %545 = vmatprep.subr.bf16.mxu0 0
        %546 = vmatpush1.bf16.msra.mxu0 0
        %547 = vmatprep.subr.bf16.mxu0 0
        %548 = vmatpush1.bf16.msra.mxu0 0
        %549 = vmatprep.subr.bf16.mxu0 0
        %550 = vmatpush1.bf16.msra.mxu0 0
        %551 = vmatprep.subr.bf16.mxu0 0
        %552 = vmatpush1.bf16.msra.mxu0 0
        %553 = vmatprep.subr.bf16.mxu0 0
        %554 = vmatpush1.bf16.msra.mxu0 0
        %555 = vmatprep.subr.bf16.mxu0 0
        %556 = vmatpush1.bf16.msra.mxu0 0
        %557 = vmatprep.subr.bf16.mxu0 0
        %558 = vmatpush1.bf16.msra.mxu0 0
        %559 = vmatprep.subr.bf16.mxu0 0
        %560 = vmatpush1.bf16.msra.mxu0 0
        %561 = vmatprep.mubr.bf16.mxu0 0
        %562 = vmatmul.mubr.bf16.gmra.mrb[0].mxu0 %v316
        %v563 = vpop.f32.mrb[0].mxu0
        %v564 = vadd.f32 %v367, %v563
        %v565 = vpop.f32.mrb[0].mxu0
        %v566 = vpop.f32.mrb[0].mxu0
        %v567 = vpop.f32.mrb[0].mxu0
        %568 = vdwg.mxu0
        %569 = vst [vmem:[%s305] sm:$0xff] %v564
        %s570 = sand.u32 %s149, 1
        %s571 = scalar_lea.sflag [#allocation4], %s570
        %s572 = sand.u32 %s149, 1
        %s573 = smul.addr %s572, 8
        %s574 = scalar_lea.vmem [#allocation10], %s573
        // Predicated region
        $region57: #{tpu_custom_call.1} parent=39 // pred_check
          %p575 = pneg %p159
        $region58: #{tpu_custom_call.1} parent=39 // pred_check_branch
          %577 = sbr.rel (%p575) target = $region60
        $region59: #{tpu_custom_call.1} parent=39 // pred_region
          %s579 = ssub.s32 128, 128
          %580 = vsyncadd %s571, %s579
          %s581 = smul.addr %s26, 128
          %s582 = scalar_lea.hbm %s5, %s581
          %s584 = sshll.u32 %s574, 4
          %s585 = int_to_ptr.vmem [resolvable:$true] %s584
          %587 = dma.vmem_to_hbm [thread:$0]  %s585, 128, %s582, %s571
        $region60: #{tpu_custom_call.1} parent=39 // pred_fallthru
          _
      $region40: #{tpu_custom_call.1} parent=5 // pred_fallthru
        _
      %p588 = scmp.le.s32.totalorder 2, %s21
      // Predicated region
      $region61: #{tpu_custom_call.1} parent=5 // pred_check
        %p589 = pneg %p588
      $region62: #{tpu_custom_call.1} parent=5 // pred_check_branch
        %591 = sbr.rel (%p589) target = $region64
      $region63: #{tpu_custom_call.1} parent=5 // pred_region
        %s592 = ssub.s32 %s21, 2
        // Predicated region
        $region65: #{tpu_custom_call.1} parent=63 // pred_check
          %p593 = pneg %p165
        $region66: #{tpu_custom_call.1} parent=63 // pred_check_branch
          %595 = sbr.rel (%p593) target = $region68
        $region67: #{tpu_custom_call.1} parent=63 // pred_region
          %s596 = sand.u32 %s150, 1
          %s597 = scalar_lea.sflag [#allocation4], %s596
          %s598 = sand.u32 %s150, 1
          %s599 = smul.addr %s598, 8
          %s600 = scalar_lea.vmem [#allocation10], %s599
          %601 = dma.done %s597, 128
        $region68: #{tpu_custom_call.1} parent=63 // pred_fallthru
          _
      $region64: #{tpu_custom_call.1} parent=5 // pred_fallthru
        _
    $region6: #{tpu_custom_call.1} parent=1 // loop_footer
      %s25 = sadd.s32 1, %s21
    $region7: #{tpu_custom_call.1} parent=1 // loop_footer_branch
      %20 = sbr.rel target = $region3
    $region8: #{tpu_custom_call.1} parent=1 // loop_exit
      _
    %602 = vsyncpa [#allocation3], 1
    %s603 = scalar_lea.sflag [#allocation3], 1
    %604 = vsyncpa %s603, 1
    %605 = vsyncpa [#allocation6], 1
    %s606 = scalar_lea.sflag [#allocation6], 1
    %607 = vsyncpa %s606, 1
    %608 = vsyncpa [#allocation9], 1
    %609 = vsyncpa [#allocation4], 1
    %s610 = scalar_lea.sflag [#allocation4], 1
    %611 = vsyncpa %s610, 1

</llo_original>
